<compile_context>
chip_gen: v5e
topology: v5e:2x2
jax: 0.10.0
libtpu: 0.0.40
codegen_flags: <defaults>
</compile_context>

<pallas_src>
import jax
import jax.numpy as jnp
from jax import lax
from jax.experimental import pallas as pl
from jax.experimental.pallas import tpu as pltpu

N_EMBD = 384
N_HEAD = 6
HEAD_SIZE = N_EMBD // N_HEAD   # 64
BLOCK_SIZE = 256               # max sequence length supported by the module
MASK_VALUE = -1e30             # behaves exactly like -inf under exp()


def head_kernel(x_ref, wq_ref, wk_ref, wv_ref, o_ref):
    bb, T, C = x_ref.shape                       # static block shape

    # ---- QKV projections: one (bb*T, C) @ (C, hs) matmul each --------------
    x = x_ref[...].reshape(bb * T, C)            # f32 activations
    xb = x.astype(jnp.bfloat16)                  # bf16 MXU operand

    q = jnp.dot(xb, wq_ref[...], preferred_element_type=jnp.float32)   # (bb*T, hs)
    k = jnp.dot(xb, wk_ref[...], preferred_element_type=jnp.float32)
    v = jnp.dot(xb, wv_ref[...], preferred_element_type=jnp.float32)

    # Fold the (non-standard, per-spec) C**-0.5 scale into q (fewer VPU muls).
    q = q * (N_EMBD ** -0.5)

    # Causal mask (tril == 1 kept).
    row = lax.broadcasted_iota(jnp.int32, (T, T), 0)
    col = lax.broadcasted_iota(jnp.int32, (T, T), 1)
    causal = col <= row

    q16 = q.astype(jnp.bfloat16)
    k16 = k.astype(jnp.bfloat16)
    v16 = v.astype(jnp.bfloat16)

    # ---- per-batch-row attention (bb is small & static -> unrolled) --------
    for b in range(bb):
        sl = slice(b * T, (b + 1) * T)
        # scores: contract the head dim of q and k directly (no explicit k.T relayout)
        s = lax.dot_general(q16[sl], k16[sl], (((1,), (1,)), ((), ())),
                            preferred_element_type=jnp.float32)        # (T, T) f32
        s = jnp.where(causal, s, MASK_VALUE)

        # explicit softmax: max-subtract / exp / row-sum, divide via EUP reciprocal
        m = jnp.max(s, axis=-1, keepdims=True)
        p = jnp.exp(s - m)
        l = jnp.sum(p, axis=-1, keepdims=True)
        p = p * pl.reciprocal(l, approx=True)
        # TODO(synk): dropout(p) would go here in training mode.

        o = jnp.dot(p.astype(jnp.bfloat16), v16[sl],
                    preferred_element_type=jnp.float32)                 # (T, hs)
        o_ref[b] = o.astype(o_ref.dtype)


def _pick_batch_block(B):
    # Fill the MXU M dim (bb*T) when B is large, but keep >= 2 grid steps so
    # both v7x TensorCores get work and DMA pipelines across steps.
    if B % 4 == 0 and B >= 8:
        return 4
    if B % 2 == 0 and B >= 4:
        return 2
    return 1


def head_attention(x, params, *, batch_block=None):
    """x: (B, T, C) float32. params: {'wq','wk','wv'} each (C, head_size)."""
    B, T, C = x.shape
    assert C == N_EMBD
    assert T <= BLOCK_SIZE

    bb = _pick_batch_block(B) if batch_block is None else batch_block
    assert B % bb == 0

    # Weights live in HBM / VMEM as bf16 (half the DMA bytes).
    wq = params["wq"].astype(jnp.bfloat16)
    wk = params["wk"].astype(jnp.bfloat16)
    wv = params["wv"].astype(jnp.bfloat16)

    weight_spec = pl.BlockSpec((C, HEAD_SIZE), lambda b: (0, 0))

    return pl.pallas_call(
        head_kernel,
        out_shape=jax.ShapeDtypeStruct((B, T, HEAD_SIZE), x.dtype),
        grid_spec=pltpu.PrefetchScalarGridSpec(
            num_scalar_prefetch=0,
            grid=(B // bb,),
            in_specs=[
                pl.BlockSpec((bb, T, C), lambda b: (b, 0, 0)),   # x
                weight_spec, weight_spec, weight_spec,           # Wq, Wk, Wv
            ],
            out_specs=pl.BlockSpec((bb, T, HEAD_SIZE), lambda b: (b, 0, 0)),
        ),
        compiler_params=pltpu.CompilerParams(
            dimension_semantics=("parallel",),
        ),
    )(x, wq, wk, wv)


# ---------------- pure-JAX reference (for verification) ----------------
def head_ref(x, p):
    B, T, C = x.shape
    q = x @ p["wq"]
    k = x @ p["wk"]
    v = x @ p["wv"]
    wei = jnp.einsum("btd,bsd->bts", q, k) * (C ** -0.5)
    mask = jnp.tril(jnp.ones((T, T), bool))
    wei = jnp.where(mask, wei, -jnp.inf)
    wei = jax.nn.softmax(wei, axis=-1)
    return jnp.einsum("bts,bsd->btd", wei, v)


def init_params(key):
    ks = jax.random.split(key, 3)
    s = 0.02
    return {
        "wq": s * jax.random.normal(ks[0], (N_EMBD, HEAD_SIZE), jnp.float32),
        "wk": s * jax.random.normal(ks[1], (N_EMBD, HEAD_SIZE), jnp.float32),
        "wv": s * jax.random.normal(ks[2], (N_EMBD, HEAD_SIZE), jnp.float32),
    }


if __name__ == "__main__":
    key = jax.random.PRNGKey(0)
    pkey, xkey = jax.random.split(key)
    params = init_params(pkey)

    B, T = 2, 128                              # T <= block_size (256); C fixed at 384
    x = jax.random.normal(xkey, (B, T, N_EMBD), jnp.float32)

    out = jax.block_until_ready(head_attention(x, params))

    # Reference uses the same bf16-rounded weight values the kernel sees, so
    # the only remaining difference is in-kernel bf16 activation rounding and
    # the approximate reciprocal (well inside the loosened tolerance).
    ref_params = {k: v.astype(jnp.bfloat16).astype(jnp.float32)
                  for k, v in params.items()}
    ref = jax.block_until_ready(head_ref(x, ref_params))

    assert out.shape == (B, T, HEAD_SIZE)
    err = jnp.max(jnp.abs(out - ref))
    assert jnp.allclose(out, ref, atol=2e-2, rtol=2e-2), f"max abs err {err}"
    print("KERNEL_OK")
</pallas_src>

<mosaic_0001>
module attributes {stable_mosaic.version = 11 : i64} {
  func.func @head_kernel(%arg0: i32, %arg1: memref<1x128x384xf32, #tpu.memory_space<vmem>>, %arg2: memref<384x64xbf16, #tpu.memory_space<vmem>>, %arg3: memref<384x64xbf16, #tpu.memory_space<vmem>>, %arg4: memref<384x64xbf16, #tpu.memory_space<vmem>>, %arg5: memref<1x128x64xf32, #tpu.memory_space<vmem>>) attributes {dimension_semantics = [#tpu.dimension_semantics<parallel>], iteration_bounds = array<i64: 2>, scalar_prefetch = 0 : i64, scratch_operands = 0 : i64, tpu.core_type = #tpu.core_type<tc>, window_params = [{transform_indices = @transform_0, window_bounds = array<i64: 1, 128, 384>}, {pipeline_mode = #tpu.pipeline_mode<synchronous>, transform_indices = @transform_1, window_bounds = array<i64: 384, 64>}, {pipeline_mode = #tpu.pipeline_mode<synchronous>, transform_indices = @transform_2, window_bounds = array<i64: 384, 64>}, {pipeline_mode = #tpu.pipeline_mode<synchronous>, transform_indices = @transform_3, window_bounds = array<i64: 384, 64>}, {transform_indices = @transform_4, window_bounds = array<i64: 1, 128, 64>}]} {
    %c0 = arith.constant 0 : index
    %c0_0 = arith.constant 0 : index
    %c0_1 = arith.constant 0 : index
    %0 = vector.load %arg1[%c0, %c0_0, %c0_1] : memref<1x128x384xf32, #tpu.memory_space<vmem>>, vector<1x128x384xf32>
    %1 = vector.shape_cast %0 : vector<1x128x384xf32> to vector<128x384xf32>
    %2 = arith.truncf %1 : vector<128x384xf32> to vector<128x384xbf16>
    %c0_2 = arith.constant 0 : index
    %c0_3 = arith.constant 0 : index
    %3 = vector.load %arg2[%c0_2, %c0_3] : memref<384x64xbf16, #tpu.memory_space<vmem>>, vector<384x64xbf16>
    %cst = arith.constant dense<0.000000e+00> : vector<128x64xf32>
    %4 = tpu.matmul %2, %3, %cst {dimension_numbers = #tpu.dot_dimension_numbers<[1], [0], [0], [1], [0, 0, 1, 1], [], []>} : vector<128x384xbf16>, vector<384x64xbf16>, vector<128x64xf32> -> vector<128x64xf32>
    %c0_4 = arith.constant 0 : index
    %c0_5 = arith.constant 0 : index
    %5 = vector.load %arg3[%c0_4, %c0_5] : memref<384x64xbf16, #tpu.memory_space<vmem>>, vector<384x64xbf16>
    %cst_6 = arith.constant dense<0.000000e+00> : vector<128x64xf32>
    %6 = tpu.matmul %2, %5, %cst_6 {dimension_numbers = #tpu.dot_dimension_numbers<[1], [0], [0], [1], [0, 0, 1, 1], [], []>} : vector<128x384xbf16>, vector<384x64xbf16>, vector<128x64xf32> -> vector<128x64xf32>
    %c0_7 = arith.constant 0 : index
    %c0_8 = arith.constant 0 : index
    %7 = vector.load %arg4[%c0_7, %c0_8] : memref<384x64xbf16, #tpu.memory_space<vmem>>, vector<384x64xbf16>
    %cst_9 = arith.constant dense<0.000000e+00> : vector<128x64xf32>
    %8 = tpu.matmul %2, %7, %cst_9 {dimension_numbers = #tpu.dot_dimension_numbers<[1], [0], [0], [1], [0, 0, 1, 1], [], []>} : vector<128x384xbf16>, vector<384x64xbf16>, vector<128x64xf32> -> vector<128x64xf32>
    %cst_10 = arith.constant 0.0510310382 : f32
    %9 = vector.broadcast %cst_10 : f32 to vector<128x64xf32>
    %10 = arith.mulf %4, %9 : vector<128x64xf32>
    %11 = tpu.iota {dimensions = array<i32: 0>} : vector<128x128xi32>
    %12 = tpu.iota {dimensions = array<i32: 1>} : vector<128x128xi32>
    %13 = arith.cmpi sle, %12, %11 : vector<128x128xi32>
    %14 = arith.truncf %10 : vector<128x64xf32> to vector<128x64xbf16>
    %15 = arith.truncf %6 : vector<128x64xf32> to vector<128x64xbf16>
    %16 = arith.truncf %8 : vector<128x64xf32> to vector<128x64xbf16>
    %cst_11 = arith.constant dense<0.000000e+00> : vector<128x128xf32>
    %17 = tpu.matmul %14, %15, %cst_11 {dimension_numbers = #tpu.dot_dimension_numbers<[1], [1], [0], [0], [0, 0, 1, 0], [], []>} : vector<128x64xbf16>, vector<128x64xbf16>, vector<128x128xf32> -> vector<128x128xf32>
    %cst_12 = arith.constant -1.000000e+30 : f32
    %18 = vector.broadcast %cst_12 : f32 to vector<128x128xf32>
    %19 = arith.select %13, %17, %18 : vector<128x128xi1>, vector<128x128xf32>
    %cst_13 = arith.constant dense<0xFF800000> : vector<128xf32>
    %20 = vector.multi_reduction <maximumf>, %19, %cst_13 [1] : vector<128x128xf32> to vector<128xf32>
    %21 = vector.shape_cast %20 : vector<128xf32> to vector<128x1xf32>
    %22 = vector.broadcast %21 : vector<128x1xf32> to vector<128x128xf32>
    %23 = arith.subf %19, %22 : vector<128x128xf32>
    %24 = math.exp %23 : vector<128x128xf32>
    %cst_14 = arith.constant dense<0.000000e+00> : vector<128xf32>
    %25 = vector.multi_reduction <add>, %24, %cst_14 [1] : vector<128x128xf32> to vector<128xf32>
    %26 = vector.shape_cast %25 : vector<128xf32> to vector<128x1xf32>
    %27 = tpu.reciprocal %26 {approx = true} : vector<128x1xf32> -> vector<128x1xf32>
    %28 = vector.broadcast %27 : vector<128x1xf32> to vector<128x128xf32>
    %29 = arith.mulf %24, %28 : vector<128x128xf32>
    %30 = arith.truncf %29 : vector<128x128xf32> to vector<128x128xbf16>
    %cst_15 = arith.constant dense<0.000000e+00> : vector<128x64xf32>
    %31 = tpu.matmul %30, %16, %cst_15 {dimension_numbers = #tpu.dot_dimension_numbers<[1], [0], [0], [1], [0, 0, 1, 1], [], []>} : vector<128x128xbf16>, vector<128x64xbf16>, vector<128x64xf32> -> vector<128x64xf32>
    %c0_16 = arith.constant 0 : index
    %c0_17 = arith.constant 0 : index
    %c0_18 = arith.constant 0 : index
    %32 = vector.load %arg5[%c0_16, %c0_17, %c0_18] : memref<1x128x64xf32, #tpu.memory_space<vmem>>, vector<1x128x64xf32>
    %33 = vector.shape_cast %32 : vector<1x128x64xf32> to vector<128x64xf32>
    %34 = vector.shape_cast %31 : vector<128x64xf32> to vector<1x128x64xf32>
    tpu.vector_store %arg5[%c0_16, %c0_17, %c0_18], %34 {strides = array<i32>} : memref<1x128x64xf32, #tpu.memory_space<vmem>>, vector<1x128x64xf32>,
    return
  }
  func.func @transform_0(%arg0: i32) -> (i32, i32, i32) {
    %c0_i32 = arith.constant 0 : i32
    %c0_i32_0 = arith.constant 0 : i32
    %c0_i32_1 = arith.constant 0 : i32
    return %arg0, %c0_i32, %c0_i32_0 : i32, i32, i32
  }
  func.func @transform_1(%arg0: i32) -> (i32, i32) {
    %c0_i32 = arith.constant 0 : i32
    %c0_i32_0 = arith.constant 0 : i32
    %c0_i32_1 = arith.constant 0 : i32
    return %c0_i32, %c0_i32_0 : i32, i32
  }
  func.func @transform_2(%arg0: i32) -> (i32, i32) {
    %c0_i32 = arith.constant 0 : i32
    %c0_i32_0 = arith.constant 0 : i32
    %c0_i32_1 = arith.constant 0 : i32
    return %c0_i32, %c0_i32_0 : i32, i32
  }
  func.func @transform_3(%arg0: i32) -> (i32, i32) {
    %c0_i32 = arith.constant 0 : i32
    %c0_i32_0 = arith.constant 0 : i32
    %c0_i32_1 = arith.constant 0 : i32
    return %c0_i32, %c0_i32_0 : i32, i32
  }
  func.func @transform_4(%arg0: i32) -> (i32, i32, i32) {
    %c0_i32 = arith.constant 0 : i32
    %c0_i32_0 = arith.constant 0 : i32
    %c0_i32_1 = arith.constant 0 : i32
    return %arg0, %c0_i32, %c0_i32_0 : i32, i32, i32
  }
}

</mosaic_0001>

<llo_original>
// kernel: tpu_custom_call.1
$region0: #{tpu_custom_call.1}
  #allocation0 [shape = 'u32[]', space=smem, size = 0x4, offset = 0x4, fixed_abs, tag = 'smem constant byte address 0x4 - core index']
  #allocation1 [shape = 'u32[72,128]{1,0:T(1,128)}', space=vmem, size = 0x9000, scoped, tag = 'internal scratch']
  %s0 = inlined_call_operand.hbm [shape: f32[2,128,384], index: 0, kind: input, shape index: {}]
  %s1 = inlined_call_operand.vmem [shape: bf16[384,64], index: 1, kind: input, shape index: {}]
  %s2 = inlined_call_operand.vmem [shape: bf16[384,64], index: 2, kind: input, shape index: {}]
  %s3 = inlined_call_operand.vmem [shape: bf16[384,64], index: 3, kind: input, shape index: {}]
  %s4 = inlined_call_operand.vmem [shape: f32[2,128,64], index: 4, kind: output, shape index: {}]
  %s5 = sld [smem:[#allocation0]]
  $region53: #{tpu_custom_call.1} parent=0
    _
  %s7 = ssub.s32 1, %s5
  %s8 = scalar_select 0, %s7, %s5
  $region1: #{tpu_custom_call.1} parent=0
    #allocation2 [shape = 'u8[393216]{0}', space=vmem, size = 0x60000, scoped, tag = 'input window, operand 0']
    #allocation3 [shape = 's32[2]{0}', space=sflag, size = 0x8, scoped, tag = 'scoped memory for tpu_custom_call.1']
    %9 = vsyncpa [#allocation3], 0
    %s10 = scalar_lea.sflag [#allocation3], 1
    %11 = vsyncpa %s10, 0
    loop: start=0, step=1, limit=4
    $region2: #{tpu_custom_call.1} parent=1 // loop_pre_header
      _
    $region3: #{tpu_custom_call.1} parent=1 // loop_header
      %s13 = sphi 0, %s17
      %p14 = scmp.ge.s32.totalorder %s13, 4
      %s23 = sphi 0, %s25
      %s26 = sphi 0, %s23
      %s27 = sphi 0, %s26
      %s43 = sphi 0, %s27
      %s47 = sphi 0, %s47
      %s49 = sphi 0, %s47
      %s50 = sphi 0, %s49
      %s64 = sphi 0, %s50
      %s68 = sphi 0, %s68
      %s70 = sphi 0, %s68
      %s71 = sphi 0, %s70
      %s85 = sphi 0, %s71
      %s89 = sphi 0, %s89
      %s91 = sphi 0, %s89
      %s92 = sphi 0, %s91
      %s106 = sphi 0, %s92
      %s112 = sphi 0, %s114
      %s115 = sphi 0, %s112
      %s116 = sphi 0, %s115
      %s132 = sphi 0, %s116
    $region4: #{tpu_custom_call.1} parent=1 // loop_header_branch
      %16 = sbr.rel (%p14) target = $region8
    $region5: #{tpu_custom_call.1} parent=1 // loop_body
      %s18 = ssub.s32 %s13, 1
      %s19 = ssub.s32 %s13, 2
      %s20 = sadd.s32 %s13, 1
      %s21 = ssub.s32 %s13, %s20
      %p22 = scmp.eq.s32.totalorder %s21, 0
      %s24 = sadd.s32 %s23, 1
      %s25 = scalar_select %p22, %s23, %s24
      %p28 = pneg %p22
      %p29 = scmp.eq.s32.totalorder %s13, 1
      %p30 = por %p28, %p29
      %p31 = scmp.ne.s32.totalorder %s23, %s26
      %p32 = scmp.eq.s32.totalorder %s13, 0
      %p33 = por %p31, %p32
      %p34 = scmp.ne.s32.totalorder %s23, %s26
      %p35 = scmp.eq.s32.totalorder %s18, 1
      %p36 = por %p34, %p35
      %p37 = scmp.ne.s32.totalorder %s26, %s27
      %p38 = scmp.eq.s32.totalorder %s18, 0
      %p39 = por %p37, %p38
      %p40 = scmp.ne.s32.totalorder %s26, %s27
      %p41 = scmp.eq.s32.totalorder %s19, 1
      %p42 = por %p40, %p41
      %p44 = scmp.ne.s32.totalorder %s27, %s43
      %p45 = scmp.eq.s32.totalorder %s19, 0
      %p46 = por %p44, %p45
      %s48 = sadd.s32 %s47, 1
      %p51 = scmp.eq.s32.totalorder %s13, 1
      %p52 = scmp.ne.s32.totalorder %s47, %s49
      %p53 = scmp.eq.s32.totalorder %s13, 0
      %p54 = por %p52, %p53
      %p55 = scmp.ne.s32.totalorder %s47, %s49
      %p56 = scmp.eq.s32.totalorder %s18, 1
      %p57 = por %p55, %p56
      %p58 = scmp.ne.s32.totalorder %s49, %s50
      %p59 = scmp.eq.s32.totalorder %s18, 0
      %p60 = por %p58, %p59
      %p61 = scmp.ne.s32.totalorder %s49, %s50
      %p62 = scmp.eq.s32.totalorder %s19, 1
      %p63 = por %p61, %p62
      %p65 = scmp.ne.s32.totalorder %s50, %s64
      %p66 = scmp.eq.s32.totalorder %s19, 0
      %p67 = por %p65, %p66
      %s69 = sadd.s32 %s68, 1
      %p72 = scmp.eq.s32.totalorder %s13, 1
      %p73 = scmp.ne.s32.totalorder %s68, %s70
      %p74 = scmp.eq.s32.totalorder %s13, 0
      %p75 = por %p73, %p74
      %p76 = scmp.ne.s32.totalorder %s68, %s70
      %p77 = scmp.eq.s32.totalorder %s18, 1
      %p78 = por %p76, %p77
      %p79 = scmp.ne.s32.totalorder %s70, %s71
      %p80 = scmp.eq.s32.totalorder %s18, 0
      %p81 = por %p79, %p80
      %p82 = scmp.ne.s32.totalorder %s70, %s71
      %p83 = scmp.eq.s32.totalorder %s19, 1
      %p84 = por %p82, %p83
      %p86 = scmp.ne.s32.totalorder %s71, %s85
      %p87 = scmp.eq.s32.totalorder %s19, 0
      %p88 = por %p86, %p87
      %s90 = sadd.s32 %s89, 1
      %p93 = scmp.eq.s32.totalorder %s13, 1
      %p94 = scmp.ne.s32.totalorder %s89, %s91
      %p95 = scmp.eq.s32.totalorder %s13, 0
      %p96 = por %p94, %p95
      %p97 = scmp.ne.s32.totalorder %s89, %s91
      %p98 = scmp.eq.s32.totalorder %s18, 1
      %p99 = por %p97, %p98
      %p100 = scmp.ne.s32.totalorder %s91, %s92
      %p101 = scmp.eq.s32.totalorder %s18, 0
      %p102 = por %p100, %p101
      %p103 = scmp.ne.s32.totalorder %s91, %s92
      %p104 = scmp.eq.s32.totalorder %s19, 1
      %p105 = por %p103, %p104
      %p107 = scmp.ne.s32.totalorder %s92, %s106
      %p108 = scmp.eq.s32.totalorder %s19, 0
      %p109 = por %p107, %p108
      %s110 = ssub.s32 %s13, %s20
      %p111 = scmp.eq.s32.totalorder %s110, 0
      %s113 = sadd.s32 %s112, 1
      %s114 = scalar_select %p111, %s112, %s113
      %p117 = pneg %p111
      %p118 = scmp.eq.s32.totalorder %s13, 1
      %p119 = por %p117, %p118
      %p120 = scmp.ne.s32.totalorder %s112, %s115
      %p121 = scmp.eq.s32.totalorder %s13, 0
      %p122 = por %p120, %p121
      %p123 = scmp.ne.s32.totalorder %s112, %s115
      %p124 = scmp.eq.s32.totalorder %s18, 1
      %p125 = por %p123, %p124
      %p126 = scmp.ne.s32.totalorder %s115, %s116
      %p127 = scmp.eq.s32.totalorder %s18, 0
      %p128 = por %p126, %p127
      %p129 = scmp.ne.s32.totalorder %s115, %s116
      %p130 = scmp.eq.s32.totalorder %s19, 1
      %p131 = por %p129, %p130
      %p133 = scmp.ne.s32.totalorder %s116, %s132
      %p134 = scmp.eq.s32.totalorder %s19, 0
      %p135 = por %p133, %p134
      %p136 = scmp.le.s32.totalorder 1, %s13
      %p137 = scmp.lt.s32.totalorder %s13, 3
      %p138 = pnand %p136, %p137
      %p139 = pneg %p138
      // Predicated region
      $region9: #{tpu_custom_call.1} parent=5 // pred_check
        _
      $region10: #{tpu_custom_call.1} parent=5 // pred_check_branch
        %141 = sbr.rel (%p138) target = $region12
      $region11: #{tpu_custom_call.1} parent=5 // pred_region
        %s142 = ssub.s32 %s13, 1
        // Predicated region
        $region13: #{tpu_custom_call.1} parent=11 // pred_check
          %p143 = pneg %p60
        $region14: #{tpu_custom_call.1} parent=11 // pred_check_branch
          %145 = sbr.rel (%p143) target = $region16
        $region15: #{tpu_custom_call.1} parent=11 // pred_region
          _
        $region16: #{tpu_custom_call.1} parent=11 // pred_fallthru
          _
        // Predicated region
        $region17: #{tpu_custom_call.1} parent=11 // pred_check
          %p146 = pneg %p81
        $region18: #{tpu_custom_call.1} parent=11 // pred_check_branch
          %148 = sbr.rel (%p146) target = $region20
        $region19: #{tpu_custom_call.1} parent=11 // pred_region
          _
        $region20: #{tpu_custom_call.1} parent=11 // pred_fallthru
          _
        // Predicated region
        $region21: #{tpu_custom_call.1} parent=11 // pred_check
          %p149 = pneg %p102
        $region22: #{tpu_custom_call.1} parent=11 // pred_check_branch
          %151 = sbr.rel (%p149) target = $region24
        $region23: #{tpu_custom_call.1} parent=11 // pred_region
          _
        $region24: #{tpu_custom_call.1} parent=11 // pred_fallthru
          _
      $region12: #{tpu_custom_call.1} parent=5 // pred_fallthru
        _
      %p152 = scmp.lt.s32.totalorder %s13, 2
      // Predicated region
      $region25: #{tpu_custom_call.1} parent=5 // pred_check
        %p153 = pneg %p152
      $region26: #{tpu_custom_call.1} parent=5 // pred_check_branch
        %155 = sbr.rel (%p153) target = $region28
      $region27: #{tpu_custom_call.1} parent=5 // pred_region
        // Predicated region
        $region29: #{tpu_custom_call.1} parent=27 // pred_check
          %p156 = pneg %p33
        $region30: #{tpu_custom_call.1} parent=27 // pred_check_branch
          %158 = sbr.rel (%p156) target = $region32
        $region31: #{tpu_custom_call.1} parent=27 // pred_region
          %s159 = sand.u32 %s23, 1
          %s160 = scalar_lea.sflag [#allocation3], %s159
          %s161 = sand.u32 %s23, 1
          %s162 = smul.addr %s161, 384
          %s163 = scalar_lea.vmem [#allocation2], %s162
          %165 = vsyncadd %s160, 0
          %s166 = smul.addr %s13, 48
          %s167 = smul.addr %s166, 8
          %s168 = scalar_lea.hbm %s0, %s167
          %s169 = sshll.u32 %s168, 4
          %s170 = int_to_ptr.hbm [resolvable:$true] %s169
          %s171 = sshll.u32 %s163, 4
          %s172 = int_to_ptr.vmem [resolvable:$true] %s171
          %177 = dma.hbm_to_vmem [thread:$0]  %s170, 6144, %s172, %s160, 384, 384, 24
        $region32: #{tpu_custom_call.1} parent=27 // pred_fallthru
          _
      $region28: #{tpu_custom_call.1} parent=5 // pred_fallthru
        _
      %p178 = scmp.le.s32.totalorder 1, %s13
      %p179 = scmp.lt.s32.totalorder %s13, 3
      %p180 = pnand %p178, %p179
      %p181 = pneg %p180
      // Predicated region
      $region33: #{tpu_custom_call.1} parent=5 // pred_check
        _
      $region34: #{tpu_custom_call.1} parent=5 // pred_check_branch
        %183 = sbr.rel (%p180) target = $region36
      $region35: #{tpu_custom_call.1} parent=5 // pred_region
        %s184 = ssub.s32 %s13, 1
        %s185 = sand.u32 %s26, 1
        %s186 = scalar_lea.sflag [#allocation3], %s185
        %s187 = sand.u32 %s26, 1
        %s188 = smul.addr %s187, 384
        %s189 = scalar_lea.vmem [#allocation2], %s188
        // Predicated region
        $region37: #{tpu_custom_call.1} parent=35 // pred_check
          %p190 = pneg %p39
        $region38: #{tpu_custom_call.1} parent=35 // pred_check_branch
          %192 = sbr.rel (%p190) target = $region40
        $region39: #{tpu_custom_call.1} parent=35 // pred_region
          %194 = dma.done %s186, 6144
        $region40: #{tpu_custom_call.1} parent=35 // pred_fallthru
          _
        %s195 = sand.u32 %s26, 1
        %s196 = scalar_lea.sflag [#allocation3], %s195
        %s197 = sand.u32 %s26, 1
        %s198 = smul.addr %s197, 384
        %s199 = scalar_lea.vmem [#allocation2], %s198
        %p200 = pneg %p39
        %p201 = pneg %p36
        %p202 = pneg %p60
        %p203 = pneg %p57
        %p204 = pneg %p81
        %p205 = pneg %p78
        %p206 = pneg %p102
        %p207 = pneg %p99
        %p208 = pneg %p128
        %p209 = pneg %p125
        %p210 = scmp.lt.s32.totalorder %s18, 1
        %s211 = scalar_select %p210, %s18, 1
        %s212 = smul.addr %s211, 16
        %s213 = smul.addr %s212, 8
        %s214 = scalar_lea.vmem %s4, %s213
        %p215 = scmp.lt.s32.totalorder %s18, 1
        %s216 = scalar_select %p215, %s18, 1
        %s217 = smul.addr %s216, 16
        %s218 = smul.addr %s217, 8
        %s219 = scalar_lea.vmem %s4, %s218
        %v220 = vld [vmem:[%s189] sm:$0xff]
        %v221 = vld [vmem:[%s189 + $0x8] sm:$0xff]
        %v222 = vld [vmem:[%s189 + $0x10] sm:$0xff]
        %v223 = vld [vmem:[%s189 + $0x18] sm:$0xff]
        %v224 = vld [vmem:[%s189 + $0x20] sm:$0xff]
        %v225 = vld [vmem:[%s189 + $0x28] sm:$0xff]
        %v226 = vld [vmem:[%s189 + $0x30] sm:$0xff]
        %v227 = vld [vmem:[%s189 + $0x38] sm:$0xff]
        %v228 = vld [vmem:[%s189 + $0x40] sm:$0xff]
        %v229 = vld [vmem:[%s189 + $0x48] sm:$0xff]
        %v230 = vld [vmem:[%s189 + $0x50] sm:$0xff]
        %v231 = vld [vmem:[%s189 + $0x58] sm:$0xff]
        %v232 = vld [vmem:[%s189 + $0x60] sm:$0xff]
        %v233 = vld [vmem:[%s189 + $0x68] sm:$0xff]
        %v234 = vld [vmem:[%s189 + $0x70] sm:$0xff]
        %v235 = vld [vmem:[%s189 + $0x78] sm:$0xff]
        %v236 = vld [vmem:[%s189 + $0x80] sm:$0xff]
        %v237 = vld [vmem:[%s189 + $0x88] sm:$0xff]
        %v238 = vld [vmem:[%s189 + $0x90] sm:$0xff]
        %v239 = vld [vmem:[%s189 + $0x98] sm:$0xff]
        %v240 = vld [vmem:[%s189 + $0xa0] sm:$0xff]
        %v241 = vld [vmem:[%s189 + $0xa8] sm:$0xff]
        %v242 = vld [vmem:[%s189 + $0xb0] sm:$0xff]
        %v243 = vld [vmem:[%s189 + $0xb8] sm:$0xff]
        %v244 = vld [vmem:[%s189 + $0xc0] sm:$0xff]
        %v245 = vld [vmem:[%s189 + $0xc8] sm:$0xff]
        %v246 = vld [vmem:[%s189 + $0xd0] sm:$0xff]
        %v247 = vld [vmem:[%s189 + $0xd8] sm:$0xff]
        %v248 = vld [vmem:[%s189 + $0xe0] sm:$0xff]
        %v249 = vld [vmem:[%s189 + $0xe8] sm:$0xff]
        %v250 = vld [vmem:[%s189 + $0xf0] sm:$0xff]
        %v251 = vld [vmem:[%s189 + $0xf8] sm:$0xff]
        %v252 = vld [vmem:[%s189 + $0x100] sm:$0xff]
        %v253 = vld [vmem:[%s189 + $0x108] sm:$0xff]
        %v254 = vld [vmem:[%s189 + $0x110] sm:$0xff]
        %v255 = vld [vmem:[%s189 + $0x118] sm:$0xff]
        %v256 = vld [vmem:[%s189 + $0x120] sm:$0xff]
        %v257 = vld [vmem:[%s189 + $0x128] sm:$0xff]
        %v258 = vld [vmem:[%s189 + $0x130] sm:$0xff]
        %v259 = vld [vmem:[%s189 + $0x138] sm:$0xff]
        %v260 = vld [vmem:[%s189 + $0x140] sm:$0xff]
        %v261 = vld [vmem:[%s189 + $0x148] sm:$0xff]
        %v262 = vld [vmem:[%s189 + $0x150] sm:$0xff]
        %v263 = vld [vmem:[%s189 + $0x158] sm:$0xff]
        %v264 = vld [vmem:[%s189 + $0x160] sm:$0xff]
        %v265 = vld [vmem:[%s189 + $0x168] sm:$0xff]
        %v266 = vld [vmem:[%s189 + $0x170] sm:$0xff]
        %v267 = vld [vmem:[%s189 + $0x178] sm:$0xff]
        %v268 = vpack.c.bf16 %v223, %v220
        %v269 = vpack.c.bf16 %v224, %v221
        %v270 = vpack.c.bf16 %v225, %v222
        %v271 = vpack.c.bf16 %v229, %v226
        %v272 = vpack.c.bf16 %v230, %v227
        %v273 = vpack.c.bf16 %v231, %v228
        %v274 = vpack.c.bf16 %v235, %v232
        %v275 = vpack.c.bf16 %v236, %v233
        %v276 = vpack.c.bf16 %v237, %v234
        %v277 = vpack.c.bf16 %v241, %v238
        %v278 = vpack.c.bf16 %v242, %v239
        %v279 = vpack.c.bf16 %v243, %v240
        %v280 = vpack.c.bf16 %v247, %v244
        %v281 = vpack.c.bf16 %v248, %v245
        %v282 = vpack.c.bf16 %v249, %v246
        %v283 = vpack.c.bf16 %v253, %v250
        %v284 = vpack.c.bf16 %v254, %v251
        %v285 = vpack.c.bf16 %v255, %v252
        %v286 = vpack.c.bf16 %v259, %v256
        %v287 = vpack.c.bf16 %v260, %v257
        %v288 = vpack.c.bf16 %v261, %v258
        %v289 = vpack.c.bf16 %v265, %v262
        %v290 = vpack.c.bf16 %v266, %v263
        %v291 = vpack.c.bf16 %v267, %v264
        %v292 = vld [vmem:[%s1] sm:$0xf]
        %v293 = vld [vmem:[%s1 + $0x4] sm:$0xf]
        %v294 = vld [vmem:[%s1 + $0x8] sm:$0xf]
        %v295 = vld [vmem:[%s1 + $0xc] sm:$0xf]
        %v296 = vld [vmem:[%s1 + $0x10] sm:$0xf]
        %v297 = vld [vmem:[%s1 + $0x14] sm:$0xf]
        %v298 = vld [vmem:[%s1 + $0x18] sm:$0xf]
        %v299 = vld [vmem:[%s1 + $0x1c] sm:$0xf]
        %v300 = vld [vmem:[%s1 + $0x20] sm:$0xf]
        %v301 = vld [vmem:[%s1 + $0x24] sm:$0xf]
        %v302 = vld [vmem:[%s1 + $0x28] sm:$0xf]
        %v303 = vld [vmem:[%s1 + $0x2c] sm:$0xf]
        %v304 = vld [vmem:[%s1 + $0x30] sm:$0xf]
        %v305 = vld [vmem:[%s1 + $0x34] sm:$0xf]
        %v306 = vld [vmem:[%s1 + $0x38] sm:$0xf]
        %v307 = vld [vmem:[%s1 + $0x3c] sm:$0xf]
        %v308 = vld [vmem:[%s1 + $0x40] sm:$0xf]
        %v309 = vld [vmem:[%s1 + $0x44] sm:$0xf]
        %v310 = vld [vmem:[%s1 + $0x48] sm:$0xf]
        %v311 = vld [vmem:[%s1 + $0x4c] sm:$0xf]
        %v312 = vld [vmem:[%s1 + $0x50] sm:$0xf]
        %v313 = vld [vmem:[%s1 + $0x54] sm:$0xf]
        %v314 = vld [vmem:[%s1 + $0x58] sm:$0xf]
        %v315 = vld [vmem:[%s1 + $0x5c] sm:$0xf]
        %v316 = vld [vmem:[%s1 + $0x60] sm:$0xf]
        %v317 = vld [vmem:[%s1 + $0x64] sm:$0xf]
        %v318 = vld [vmem:[%s1 + $0x68] sm:$0xf]
        %v319 = vld [vmem:[%s1 + $0x6c] sm:$0xf]
        %v320 = vld [vmem:[%s1 + $0x70] sm:$0xf]
        %v321 = vld [vmem:[%s1 + $0x74] sm:$0xf]
        %v322 = vld [vmem:[%s1 + $0x78] sm:$0xf]
        %v323 = vld [vmem:[%s1 + $0x7c] sm:$0xf]
        %v324 = vld [vmem:[%s1 + $0x80] sm:$0xf]
        %v325 = vld [vmem:[%s1 + $0x84] sm:$0xf]
        %v326 = vld [vmem:[%s1 + $0x88] sm:$0xf]
        %v327 = vld [vmem:[%s1 + $0x8c] sm:$0xf]
        %v328 = vld [vmem:[%s1 + $0x90] sm:$0xf]
        %v329 = vld [vmem:[%s1 + $0x94] sm:$0xf]
        %v330 = vld [vmem:[%s1 + $0x98] sm:$0xf]
        %v331 = vld [vmem:[%s1 + $0x9c] sm:$0xf]
        %v332 = vld [vmem:[%s1 + $0xa0] sm:$0xf]
        %v333 = vld [vmem:[%s1 + $0xa4] sm:$0xf]
        %v334 = vld [vmem:[%s1 + $0xa8] sm:$0xf]
        %v335 = vld [vmem:[%s1 + $0xac] sm:$0xf]
        %v336 = vld [vmem:[%s1 + $0xb0] sm:$0xf]
        %v337 = vld [vmem:[%s1 + $0xb4] sm:$0xf]
        %v338 = vld [vmem:[%s1 + $0xb8] sm:$0xf]
        %v339 = vld [vmem:[%s1 + $0xbc] sm:$0xf]
        %v388 = vunpack.c.l.b16 %v292
        %v389 = vunpack.c.l.b16 %v293
        %v390 = vunpack.c.l.b16 %v294
        %v391 = vunpack.c.l.b16 %v295
        %v392 = vunpack.c.l.b16 %v296
        %v393 = vunpack.c.l.b16 %v297
        %v394 = vunpack.c.l.b16 %v298
        %v395 = vunpack.c.l.b16 %v299
        %v396 = vunpack.c.l.b16 %v300
        %v397 = vunpack.c.l.b16 %v301
        %v398 = vunpack.c.l.b16 %v302
        %v399 = vunpack.c.l.b16 %v303
        %v400 = vunpack.c.l.b16 %v304
        %v401 = vunpack.c.l.b16 %v305
        %v402 = vunpack.c.l.b16 %v306
        %v403 = vunpack.c.l.b16 %v307
        %v404 = vunpack.c.l.b16 %v308
        %v405 = vunpack.c.l.b16 %v309
        %v406 = vunpack.c.l.b16 %v310
        %v407 = vunpack.c.l.b16 %v311
        %v408 = vunpack.c.l.b16 %v312
        %v409 = vunpack.c.l.b16 %v313
        %v410 = vunpack.c.l.b16 %v314
        %v411 = vunpack.c.l.b16 %v315
        %v412 = vunpack.c.l.b16 %v316
        %v413 = vunpack.c.l.b16 %v317
        %v414 = vunpack.c.l.b16 %v318
        %v415 = vunpack.c.l.b16 %v319
        %v416 = vunpack.c.l.b16 %v320
        %v417 = vunpack.c.l.b16 %v321
        %v418 = vunpack.c.l.b16 %v322
        %v419 = vunpack.c.l.b16 %v323
        %v420 = vunpack.c.l.b16 %v324
        %v421 = vunpack.c.l.b16 %v325
        %v422 = vunpack.c.l.b16 %v326
        %v423 = vunpack.c.l.b16 %v327
        %v424 = vunpack.c.l.b16 %v328
        %v425 = vunpack.c.l.b16 %v329
        %v426 = vunpack.c.l.b16 %v330
        %v427 = vunpack.c.l.b16 %v331
        %v428 = vunpack.c.l.b16 %v332
        %v429 = vunpack.c.l.b16 %v333
        %v430 = vunpack.c.l.b16 %v334
        %v431 = vunpack.c.l.b16 %v335
        %v432 = vunpack.c.l.b16 %v336
        %v433 = vunpack.c.l.b16 %v337
        %v434 = vunpack.c.l.b16 %v338
        %v435 = vunpack.c.l.b16 %v339
        %v436 = vpack.c.b16 %v389, %v388
        %v437 = vpack.c.b16 %v391, %v390
        %v438 = vpack.c.b16 %v393, %v392
        %v439 = vpack.c.b16 %v395, %v394
        %v440 = vpack.c.b16 %v397, %v396
        %v441 = vpack.c.b16 %v399, %v398
        %v442 = vpack.c.b16 %v401, %v400
        %v443 = vpack.c.b16 %v403, %v402
        %v444 = vpack.c.b16 %v405, %v404
        %v445 = vpack.c.b16 %v407, %v406
        %v446 = vpack.c.b16 %v409, %v408
        %v447 = vpack.c.b16 %v411, %v410
        %v448 = vpack.c.b16 %v413, %v412
        %v449 = vpack.c.b16 %v415, %v414
        %v450 = vpack.c.b16 %v417, %v416
        %v451 = vpack.c.b16 %v419, %v418
        %v452 = vpack.c.b16 %v421, %v420
        %v453 = vpack.c.b16 %v423, %v422
        %v454 = vpack.c.b16 %v425, %v424
        %v455 = vpack.c.b16 %v427, %v426
        %v456 = vpack.c.b16 %v429, %v428
        %v457 = vpack.c.b16 %v431, %v430
        %v458 = vpack.c.b16 %v433, %v432
        %v459 = vpack.c.b16 %v435, %v434
        %484 = vmatpush.bf16.msra.mxu0 %v443
        %485 = vmatpush.bf16.msra.mxu0 %v442
        %486 = vmatpush.bf16.msra.mxu0 %v441
        %487 = vmatpush.bf16.msra.mxu0 %v440
        %488 = vmatpush.bf16.msra.mxu0 %v439
        %489 = vmatpush.bf16.msra.mxu0 %v438
        %490 = vmatpush.bf16.msra.mxu0 %v437
        %491 = vmatpush.bf16.msra.mxu0 %v436
        %492 = vmatmul.bf16.gmra.mxu0 %v268
        %v493 = vpop.f32.mrf.mxu0
        %v494 = vadd.f32 0.0, %v493
        %v495 = vpop.f32.mrf.mxu0
        %v496 = vadd.f32 0.0, %v495
        %497 = vmatmul.bf16.gmra.mxu0 %v271
        %v498 = vpop.f32.mrf.mxu0
        %v499 = vadd.f32 0.0, %v498
        %v500 = vpop.f32.mrf.mxu0
        %v501 = vadd.f32 0.0, %v500
        %502 = vmatmul.bf16.gmra.mxu0 %v274
        %v503 = vpop.f32.mrf.mxu0
        %v504 = vadd.f32 0.0, %v503
        %v505 = vpop.f32.mrf.mxu0
        %v506 = vadd.f32 0.0, %v505
        %507 = vmatmul.bf16.gmra.mxu0 %v277
        %v508 = vpop.f32.mrf.mxu0
        %v509 = vadd.f32 0.0, %v508
        %v510 = vpop.f32.mrf.mxu0
        %v511 = vadd.f32 0.0, %v510
        %512 = vmatmul.bf16.gmra.mxu0 %v280
        %v513 = vpop.f32.mrf.mxu0
        %v514 = vadd.f32 0.0, %v513
        %v515 = vpop.f32.mrf.mxu0
        %v516 = vadd.f32 0.0, %v515
        %517 = vmatmul.bf16.gmra.mxu0 %v283
        %v518 = vpop.f32.mrf.mxu0
        %v519 = vadd.f32 0.0, %v518
        %v520 = vpop.f32.mrf.mxu0
        %v521 = vadd.f32 0.0, %v520
        %522 = vmatmul.bf16.gmra.mxu0 %v286
        %v523 = vpop.f32.mrf.mxu0
        %v524 = vadd.f32 0.0, %v523
        %v525 = vpop.f32.mrf.mxu0
        %v526 = vadd.f32 0.0, %v525
        %527 = vmatmul.bf16.gmra.mxu0 %v289
        %v528 = vpop.f32.mrf.mxu0
        %v529 = vadd.f32 0.0, %v528
        %v530 = vpop.f32.mrf.mxu0
        %v531 = vadd.f32 0.0, %v530
        %532 = vdwg.mxu0
        %533 = vmatpush.bf16.msra.mxu0 %v451
        %534 = vmatpush.bf16.msra.mxu0 %v450
        %535 = vmatpush.bf16.msra.mxu0 %v449
        %536 = vmatpush.bf16.msra.mxu0 %v448
        %537 = vmatpush.bf16.msra.mxu0 %v447
        %538 = vmatpush.bf16.msra.mxu0 %v446
        %539 = vmatpush.bf16.msra.mxu0 %v445
        %540 = vmatpush.bf16.msra.mxu0 %v444
        %541 = vmatmul.bf16.gmra.mxu0 %v269
        %v542 = vpop.f32.mrf.mxu0
        %v543 = vadd.f32 %v494, %v542
        %v544 = vpop.f32.mrf.mxu0
        %v545 = vadd.f32 %v496, %v544
        %546 = vmatmul.bf16.gmra.mxu0 %v272
        %v547 = vpop.f32.mrf.mxu0
        %v548 = vadd.f32 %v499, %v547
        %v549 = vpop.f32.mrf.mxu0
        %v550 = vadd.f32 %v501, %v549
        %551 = vmatmul.bf16.gmra.mxu0 %v275
        %v552 = vpop.f32.mrf.mxu0
        %v553 = vadd.f32 %v504, %v552
        %v554 = vpop.f32.mrf.mxu0
        %v555 = vadd.f32 %v506, %v554
        %556 = vmatmul.bf16.gmra.mxu0 %v278
        %v557 = vpop.f32.mrf.mxu0
        %v558 = vadd.f32 %v509, %v557
        %v559 = vpop.f32.mrf.mxu0
        %v560 = vadd.f32 %v511, %v559
        %561 = vmatmul.bf16.gmra.mxu0 %v281
        %v562 = vpop.f32.mrf.mxu0
        %v563 = vadd.f32 %v514, %v562
        %v564 = vpop.f32.mrf.mxu0
        %v565 = vadd.f32 %v516, %v564
        %566 = vmatmul.bf16.gmra.mxu0 %v284
        %v567 = vpop.f32.mrf.mxu0
        %v568 = vadd.f32 %v519, %v567
        %v569 = vpop.f32.mrf.mxu0
        %v570 = vadd.f32 %v521, %v569
        %571 = vmatmul.bf16.gmra.mxu0 %v287
        %v572 = vpop.f32.mrf.mxu0
        %v573 = vadd.f32 %v524, %v572
        %v574 = vpop.f32.mrf.mxu0
        %v575 = vadd.f32 %v526, %v574
        %576 = vmatmul.bf16.gmra.mxu0 %v290
        %v577 = vpop.f32.mrf.mxu0
        %v578 = vadd.f32 %v529, %v577
        %v579 = vpop.f32.mrf.mxu0
        %v580 = vadd.f32 %v531, %v579
        %581 = vdwg.mxu0
        %582 = vmatpush.bf16.msra.mxu0 %v459
        %583 = vmatpush.bf16.msra.mxu0 %v458
        %584 = vmatpush.bf16.msra.mxu0 %v457
        %585 = vmatpush.bf16.msra.mxu0 %v456
        %586 = vmatpush.bf16.msra.mxu0 %v455
        %587 = vmatpush.bf16.msra.mxu0 %v454
        %588 = vmatpush.bf16.msra.mxu0 %v453
        %589 = vmatpush.bf16.msra.mxu0 %v452
        %590 = vmatmul.bf16.gmra.mxu0 %v270
        %v591 = vpop.f32.mrf.mxu0
        %v592 = vadd.f32 %v543, %v591
        %v593 = vpop.f32.mrf.mxu0
        %v594 = vadd.f32 %v545, %v593
        %595 = vmatmul.bf16.gmra.mxu0 %v273
        %v596 = vpop.f32.mrf.mxu0
        %v597 = vadd.f32 %v548, %v596
        %v598 = vpop.f32.mrf.mxu0
        %v599 = vadd.f32 %v550, %v598
        %600 = vmatmul.bf16.gmra.mxu0 %v276
        %v601 = vpop.f32.mrf.mxu0
        %v602 = vadd.f32 %v553, %v601
        %v603 = vpop.f32.mrf.mxu0
        %v604 = vadd.f32 %v555, %v603
        %605 = vmatmul.bf16.gmra.mxu0 %v279
        %v606 = vpop.f32.mrf.mxu0
        %v607 = vadd.f32 %v558, %v606
        %v608 = vpop.f32.mrf.mxu0
        %v609 = vadd.f32 %v560, %v608
        %610 = vmatmul.bf16.gmra.mxu0 %v282
        %v611 = vpop.f32.mrf.mxu0
        %v612 = vadd.f32 %v563, %v611
        %v613 = vpop.f32.mrf.mxu0
        %v614 = vadd.f32 %v565, %v613
        %615 = vmatmul.bf16.gmra.mxu0 %v285
        %v616 = vpop.f32.mrf.mxu0
        %v617 = vadd.f32 %v568, %v616
        %v618 = vpop.f32.mrf.mxu0
        %v619 = vadd.f32 %v570, %v618
        %620 = vmatmul.bf16.gmra.mxu0 %v288
        %v621 = vpop.f32.mrf.mxu0
        %v622 = vadd.f32 %v573, %v621
        %v623 = vpop.f32.mrf.mxu0
        %v624 = vadd.f32 %v575, %v623
        %625 = vmatmul.bf16.gmra.mxu0 %v291
        %v626 = vpop.f32.mrf.mxu0
        %v627 = vadd.f32 %v578, %v626
        %v628 = vpop.f32.mrf.mxu0
        %v629 = vadd.f32 %v580, %v628
        %630 = vdwg.mxu0
        %v631 = vld [vmem:[%s2] sm:$0xf]
        %v632 = vld [vmem:[%s2 + $0x4] sm:$0xf]
        %v633 = vld [vmem:[%s2 + $0x8] sm:$0xf]
        %v634 = vld [vmem:[%s2 + $0xc] sm:$0xf]
        %v635 = vld [vmem:[%s2 + $0x10] sm:$0xf]
        %v636 = vld [vmem:[%s2 + $0x14] sm:$0xf]
        %v637 = vld [vmem:[%s2 + $0x18] sm:$0xf]
        %v638 = vld [vmem:[%s2 + $0x1c] sm:$0xf]
        %v639 = vld [vmem:[%s2 + $0x20] sm:$0xf]
        %v640 = vld [vmem:[%s2 + $0x24] sm:$0xf]
        %v641 = vld [vmem:[%s2 + $0x28] sm:$0xf]
        %v642 = vld [vmem:[%s2 + $0x2c] sm:$0xf]
        %v643 = vld [vmem:[%s2 + $0x30] sm:$0xf]
        %v644 = vld [vmem:[%s2 + $0x34] sm:$0xf]
        %v645 = vld [vmem:[%s2 + $0x38] sm:$0xf]
        %v646 = vld [vmem:[%s2 + $0x3c] sm:$0xf]
        %v647 = vld [vmem:[%s2 + $0x40] sm:$0xf]
        %v648 = vld [vmem:[%s2 + $0x44] sm:$0xf]
        %v649 = vld [vmem:[%s2 + $0x48] sm:$0xf]
        %v650 = vld [vmem:[%s2 + $0x4c] sm:$0xf]
        %v651 = vld [vmem:[%s2 + $0x50] sm:$0xf]
        %v652 = vld [vmem:[%s2 + $0x54] sm:$0xf]
        %v653 = vld [vmem:[%s2 + $0x58] sm:$0xf]
        %v654 = vld [vmem:[%s2 + $0x5c] sm:$0xf]
        %v655 = vld [vmem:[%s2 + $0x60] sm:$0xf]
        %v656 = vld [vmem:[%s2 + $0x64] sm:$0xf]
        %v657 = vld [vmem:[%s2 + $0x68] sm:$0xf]
        %v658 = vld [vmem:[%s2 + $0x6c] sm:$0xf]
        %v659 = vld [vmem:[%s2 + $0x70] sm:$0xf]
        %v660 = vld [vmem:[%s2 + $0x74] sm:$0xf]
        %v661 = vld [vmem:[%s2 + $0x78] sm:$0xf]
        %v662 = vld [vmem:[%s2 + $0x7c] sm:$0xf]
        %v663 = vld [vmem:[%s2 + $0x80] sm:$0xf]
        %v664 = vld [vmem:[%s2 + $0x84] sm:$0xf]
        %v665 = vld [vmem:[%s2 + $0x88] sm:$0xf]
        %v666 = vld [vmem:[%s2 + $0x8c] sm:$0xf]
        %v667 = vld [vmem:[%s2 + $0x90] sm:$0xf]
        %v668 = vld [vmem:[%s2 + $0x94] sm:$0xf]
        %v669 = vld [vmem:[%s2 + $0x98] sm:$0xf]
        %v670 = vld [vmem:[%s2 + $0x9c] sm:$0xf]
        %v671 = vld [vmem:[%s2 + $0xa0] sm:$0xf]
        %v672 = vld [vmem:[%s2 + $0xa4] sm:$0xf]
        %v673 = vld [vmem:[%s2 + $0xa8] sm:$0xf]
        %v674 = vld [vmem:[%s2 + $0xac] sm:$0xf]
        %v675 = vld [vmem:[%s2 + $0xb0] sm:$0xf]
        %v676 = vld [vmem:[%s2 + $0xb4] sm:$0xf]
        %v677 = vld [vmem:[%s2 + $0xb8] sm:$0xf]
        %v678 = vld [vmem:[%s2 + $0xbc] sm:$0xf]
        %v727 = vunpack.c.l.b16 %v631
        %v728 = vunpack.c.l.b16 %v632
        %v729 = vunpack.c.l.b16 %v633
        %v730 = vunpack.c.l.b16 %v634
        %v731 = vunpack.c.l.b16 %v635
        %v732 = vunpack.c.l.b16 %v636
        %v733 = vunpack.c.l.b16 %v637
        %v734 = vunpack.c.l.b16 %v638
        %v735 = vunpack.c.l.b16 %v639
        %v736 = vunpack.c.l.b16 %v640
        %v737 = vunpack.c.l.b16 %v641
        %v738 = vunpack.c.l.b16 %v642
        %v739 = vunpack.c.l.b16 %v643
        %v740 = vunpack.c.l.b16 %v644
        %v741 = vunpack.c.l.b16 %v645
        %v742 = vunpack.c.l.b16 %v646
        %v743 = vunpack.c.l.b16 %v647
        %v744 = vunpack.c.l.b16 %v648
        %v745 = vunpack.c.l.b16 %v649
        %v746 = vunpack.c.l.b16 %v650
        %v747 = vunpack.c.l.b16 %v651
        %v748 = vunpack.c.l.b16 %v652
        %v749 = vunpack.c.l.b16 %v653
        %v750 = vunpack.c.l.b16 %v654
        %v751 = vunpack.c.l.b16 %v655
        %v752 = vunpack.c.l.b16 %v656
        %v753 = vunpack.c.l.b16 %v657
        %v754 = vunpack.c.l.b16 %v658
        %v755 = vunpack.c.l.b16 %v659
        %v756 = vunpack.c.l.b16 %v660
        %v757 = vunpack.c.l.b16 %v661
        %v758 = vunpack.c.l.b16 %v662
        %v759 = vunpack.c.l.b16 %v663
        %v760 = vunpack.c.l.b16 %v664
        %v761 = vunpack.c.l.b16 %v665
        %v762 = vunpack.c.l.b16 %v666
        %v763 = vunpack.c.l.b16 %v667
        %v764 = vunpack.c.l.b16 %v668
        %v765 = vunpack.c.l.b16 %v669
        %v766 = vunpack.c.l.b16 %v670
        %v767 = vunpack.c.l.b16 %v671
        %v768 = vunpack.c.l.b16 %v672
        %v769 = vunpack.c.l.b16 %v673
        %v770 = vunpack.c.l.b16 %v674
        %v771 = vunpack.c.l.b16 %v675
        %v772 = vunpack.c.l.b16 %v676
        %v773 = vunpack.c.l.b16 %v677
        %v774 = vunpack.c.l.b16 %v678
        %v775 = vpack.c.b16 %v728, %v727
        %v776 = vpack.c.b16 %v730, %v729
        %v777 = vpack.c.b16 %v732, %v731
        %v778 = vpack.c.b16 %v734, %v733
        %v779 = vpack.c.b16 %v736, %v735
        %v780 = vpack.c.b16 %v738, %v737
        %v781 = vpack.c.b16 %v740, %v739
        %v782 = vpack.c.b16 %v742, %v741
        %v783 = vpack.c.b16 %v744, %v743
        %v784 = vpack.c.b16 %v746, %v745
        %v785 = vpack.c.b16 %v748, %v747
        %v786 = vpack.c.b16 %v750, %v749
        %v787 = vpack.c.b16 %v752, %v751
        %v788 = vpack.c.b16 %v754, %v753
        %v789 = vpack.c.b16 %v756, %v755
        %v790 = vpack.c.b16 %v758, %v757
        %v791 = vpack.c.b16 %v760, %v759
        %v792 = vpack.c.b16 %v762, %v761
        %v793 = vpack.c.b16 %v764, %v763
        %v794 = vpack.c.b16 %v766, %v765
        %v795 = vpack.c.b16 %v768, %v767
        %v796 = vpack.c.b16 %v770, %v769
        %v797 = vpack.c.b16 %v772, %v771
        %v798 = vpack.c.b16 %v774, %v773
        %823 = vmatpush.bf16.msra.mxu0 %v782
        %824 = vmatpush.bf16.msra.mxu0 %v781
        %825 = vmatpush.bf16.msra.mxu0 %v780
        %826 = vmatpush.bf16.msra.mxu0 %v779
        %827 = vmatpush.bf16.msra.mxu0 %v778
        %828 = vmatpush.bf16.msra.mxu0 %v777
        %829 = vmatpush.bf16.msra.mxu0 %v776
        %830 = vmatpush.bf16.msra.mxu0 %v775
        %831 = vmatmul.bf16.gmra.mxu0 %v268
        %v832 = vpop.f32.mrf.mxu0
        %v833 = vadd.f32 0.0, %v832
        %v834 = vpop.f32.mrf.mxu0
        %v835 = vadd.f32 0.0, %v834
        %836 = vmatmul.bf16.gmra.mxu0 %v271
        %v837 = vpop.f32.mrf.mxu0
        %v838 = vadd.f32 0.0, %v837
        %v839 = vpop.f32.mrf.mxu0
        %v840 = vadd.f32 0.0, %v839
        %841 = vmatmul.bf16.gmra.mxu0 %v274
        %v842 = vpop.f32.mrf.mxu0
        %v843 = vadd.f32 0.0, %v842
        %v844 = vpop.f32.mrf.mxu0
        %v845 = vadd.f32 0.0, %v844
        %846 = vmatmul.bf16.gmra.mxu0 %v277
        %v847 = vpop.f32.mrf.mxu0
        %v848 = vadd.f32 0.0, %v847
        %v849 = vpop.f32.mrf.mxu0
        %v850 = vadd.f32 0.0, %v849
        %851 = vmatmul.bf16.gmra.mxu0 %v280
        %v852 = vpop.f32.mrf.mxu0
        %v853 = vadd.f32 0.0, %v852
        %v854 = vpop.f32.mrf.mxu0
        %v855 = vadd.f32 0.0, %v854
        %856 = vmatmul.bf16.gmra.mxu0 %v283
        %v857 = vpop.f32.mrf.mxu0
        %v858 = vadd.f32 0.0, %v857
        %v859 = vpop.f32.mrf.mxu0
        %v860 = vadd.f32 0.0, %v859
        %861 = vmatmul.bf16.gmra.mxu0 %v286
        %v862 = vpop.f32.mrf.mxu0
        %v863 = vadd.f32 0.0, %v862
        %v864 = vpop.f32.mrf.mxu0
        %v865 = vadd.f32 0.0, %v864
        %866 = vmatmul.bf16.gmra.mxu0 %v289
        %v867 = vpop.f32.mrf.mxu0
        %v868 = vadd.f32 0.0, %v867
        %v869 = vpop.f32.mrf.mxu0
        %v870 = vadd.f32 0.0, %v869
        %871 = vdwg.mxu0
        %872 = vmatpush.bf16.msra.mxu0 %v790
        %873 = vmatpush.bf16.msra.mxu0 %v789
        %874 = vmatpush.bf16.msra.mxu0 %v788
        %875 = vmatpush.bf16.msra.mxu0 %v787
        %876 = vmatpush.bf16.msra.mxu0 %v786
        %877 = vmatpush.bf16.msra.mxu0 %v785
        %878 = vmatpush.bf16.msra.mxu0 %v784
        %879 = vmatpush.bf16.msra.mxu0 %v783
        %880 = vmatmul.bf16.gmra.mxu0 %v269
        %v881 = vpop.f32.mrf.mxu0
        %v882 = vadd.f32 %v833, %v881
        %v883 = vpop.f32.mrf.mxu0
        %v884 = vadd.f32 %v835, %v883
        %885 = vmatmul.bf16.gmra.mxu0 %v272
        %v886 = vpop.f32.mrf.mxu0
        %v887 = vadd.f32 %v838, %v886
        %v888 = vpop.f32.mrf.mxu0
        %v889 = vadd.f32 %v840, %v888
        %890 = vmatmul.bf16.gmra.mxu0 %v275
        %v891 = vpop.f32.mrf.mxu0
        %v892 = vadd.f32 %v843, %v891
        %v893 = vpop.f32.mrf.mxu0
        %v894 = vadd.f32 %v845, %v893
        %895 = vmatmul.bf16.gmra.mxu0 %v278
        %v896 = vpop.f32.mrf.mxu0
        %v897 = vadd.f32 %v848, %v896
        %v898 = vpop.f32.mrf.mxu0
        %v899 = vadd.f32 %v850, %v898
        %900 = vmatmul.bf16.gmra.mxu0 %v281
        %v901 = vpop.f32.mrf.mxu0
        %v902 = vadd.f32 %v853, %v901
        %v903 = vpop.f32.mrf.mxu0
        %v904 = vadd.f32 %v855, %v903
        %905 = vmatmul.bf16.gmra.mxu0 %v284
        %v906 = vpop.f32.mrf.mxu0
        %v907 = vadd.f32 %v858, %v906
        %v908 = vpop.f32.mrf.mxu0
        %v909 = vadd.f32 %v860, %v908
        %910 = vmatmul.bf16.gmra.mxu0 %v287
        %v911 = vpop.f32.mrf.mxu0
        %v912 = vadd.f32 %v863, %v911
        %v913 = vpop.f32.mrf.mxu0
        %v914 = vadd.f32 %v865, %v913
        %915 = vmatmul.bf16.gmra.mxu0 %v290
        %v916 = vpop.f32.mrf.mxu0
        %v917 = vadd.f32 %v868, %v916
        %v918 = vpop.f32.mrf.mxu0
        %v919 = vadd.f32 %v870, %v918
        %920 = vdwg.mxu0
        %921 = vmatpush.bf16.msra.mxu0 %v798
        %922 = vmatpush.bf16.msra.mxu0 %v797
        %923 = vmatpush.bf16.msra.mxu0 %v796
        %924 = vmatpush.bf16.msra.mxu0 %v795
        %925 = vmatpush.bf16.msra.mxu0 %v794
        %926 = vmatpush.bf16.msra.mxu0 %v793
        %927 = vmatpush.bf16.msra.mxu0 %v792
        %928 = vmatpush.bf16.msra.mxu0 %v791
        %929 = vmatmul.bf16.gmra.mxu0 %v270
        %v930 = vpop.f32.mrf.mxu0
        %v931 = vadd.f32 %v882, %v930
        %v932 = vpop.f32.mrf.mxu0
        %v933 = vadd.f32 %v884, %v932
        %934 = vmatmul.bf16.gmra.mxu0 %v273
        %v935 = vpop.f32.mrf.mxu0
        %v936 = vadd.f32 %v887, %v935
        %v937 = vpop.f32.mrf.mxu0
        %v938 = vadd.f32 %v889, %v937
        %939 = vmatmul.bf16.gmra.mxu0 %v276
        %v940 = vpop.f32.mrf.mxu0
        %v941 = vadd.f32 %v892, %v940
        %v942 = vpop.f32.mrf.mxu0
        %v943 = vadd.f32 %v894, %v942
        %944 = vmatmul.bf16.gmra.mxu0 %v279
        %v945 = vpop.f32.mrf.mxu0
        %v946 = vadd.f32 %v897, %v945
        %v947 = vpop.f32.mrf.mxu0
        %v948 = vadd.f32 %v899, %v947
        %949 = vmatmul.bf16.gmra.mxu0 %v282
        %v950 = vpop.f32.mrf.mxu0
        %v951 = vadd.f32 %v902, %v950
        %v952 = vpop.f32.mrf.mxu0
        %v953 = vadd.f32 %v904, %v952
        %954 = vmatmul.bf16.gmra.mxu0 %v285
        %v955 = vpop.f32.mrf.mxu0
        %v956 = vadd.f32 %v907, %v955
        %v957 = vpop.f32.mrf.mxu0
        %v958 = vadd.f32 %v909, %v957
        %959 = vmatmul.bf16.gmra.mxu0 %v288
        %v960 = vpop.f32.mrf.mxu0
        %v961 = vadd.f32 %v912, %v960
        %v962 = vpop.f32.mrf.mxu0
        %v963 = vadd.f32 %v914, %v962
        %964 = vmatmul.bf16.gmra.mxu0 %v291
        %v965 = vpop.f32.mrf.mxu0
        %v966 = vadd.f32 %v917, %v965
        %v967 = vpop.f32.mrf.mxu0
        %v968 = vadd.f32 %v919, %v967
        %969 = vdwg.mxu0
        %v970 = vld [vmem:[%s3] sm:$0xf]
        %v971 = vld [vmem:[%s3 + $0x4] sm:$0xf]
        %v972 = vld [vmem:[%s3 + $0x8] sm:$0xf]
        %v973 = vld [vmem:[%s3 + $0xc] sm:$0xf]
        %v974 = vld [vmem:[%s3 + $0x10] sm:$0xf]
        %v975 = vld [vmem:[%s3 + $0x14] sm:$0xf]
        %v976 = vld [vmem:[%s3 + $0x18] sm:$0xf]
        %v977 = vld [vmem:[%s3 + $0x1c] sm:$0xf]
        %v978 = vld [vmem:[%s3 + $0x20] sm:$0xf]
        %v979 = vld [vmem:[%s3 + $0x24] sm:$0xf]
        %v980 = vld [vmem:[%s3 + $0x28] sm:$0xf]
        %v981 = vld [vmem:[%s3 + $0x2c] sm:$0xf]
        %v982 = vld [vmem:[%s3 + $0x30] sm:$0xf]
        %v983 = vld [vmem:[%s3 + $0x34] sm:$0xf]
        %v984 = vld [vmem:[%s3 + $0x38] sm:$0xf]
        %v985 = vld [vmem:[%s3 + $0x3c] sm:$0xf]
        %v986 = vld [vmem:[%s3 + $0x40] sm:$0xf]
        %v987 = vld [vmem:[%s3 + $0x44] sm:$0xf]
        %v988 = vld [vmem:[%s3 + $0x48] sm:$0xf]
        %v989 = vld [vmem:[%s3 + $0x4c] sm:$0xf]
        %v990 = vld [vmem:[%s3 + $0x50] sm:$0xf]
        %v991 = vld [vmem:[%s3 + $0x54] sm:$0xf]
        %v992 = vld [vmem:[%s3 + $0x58] sm:$0xf]
        %v993 = vld [vmem:[%s3 + $0x5c] sm:$0xf]
        %v994 = vld [vmem:[%s3 + $0x60] sm:$0xf]
        %v995 = vld [vmem:[%s3 + $0x64] sm:$0xf]
        %v996 = vld [vmem:[%s3 + $0x68] sm:$0xf]
        %v997 = vld [vmem:[%s3 + $0x6c] sm:$0xf]
        %v998 = vld [vmem:[%s3 + $0x70] sm:$0xf]
        %v999 = vld [vmem:[%s3 + $0x74] sm:$0xf]
        %v1000 = vld [vmem:[%s3 + $0x78] sm:$0xf]
        %v1001 = vld [vmem:[%s3 + $0x7c] sm:$0xf]
        %v1002 = vld [vmem:[%s3 + $0x80] sm:$0xf]
        %v1003 = vld [vmem:[%s3 + $0x84] sm:$0xf]
        %v1004 = vld [vmem:[%s3 + $0x88] sm:$0xf]
        %v1005 = vld [vmem:[%s3 + $0x8c] sm:$0xf]
        %v1006 = vld [vmem:[%s3 + $0x90] sm:$0xf]
        %v1007 = vld [vmem:[%s3 + $0x94] sm:$0xf]
        %v1008 = vld [vmem:[%s3 + $0x98] sm:$0xf]
        %v1009 = vld [vmem:[%s3 + $0x9c] sm:$0xf]
        %v1010 = vld [vmem:[%s3 + $0xa0] sm:$0xf]
        %v1011 = vld [vmem:[%s3 + $0xa4] sm:$0xf]
        %v1012 = vld [vmem:[%s3 + $0xa8] sm:$0xf]
        %v1013 = vld [vmem:[%s3 + $0xac] sm:$0xf]
        %v1014 = vld [vmem:[%s3 + $0xb0] sm:$0xf]
        %v1015 = vld [vmem:[%s3 + $0xb4] sm:$0xf]
        %v1016 = vld [vmem:[%s3 + $0xb8] sm:$0xf]
        %v1017 = vld [vmem:[%s3 + $0xbc] sm:$0xf]
        %v1066 = vunpack.c.l.b16 %v970
        %v1067 = vunpack.c.l.b16 %v971
        %v1068 = vunpack.c.l.b16 %v972
        %v1069 = vunpack.c.l.b16 %v973
        %v1070 = vunpack.c.l.b16 %v974
        %v1071 = vunpack.c.l.b16 %v975
        %v1072 = vunpack.c.l.b16 %v976
        %v1073 = vunpack.c.l.b16 %v977
        %v1074 = vunpack.c.l.b16 %v978
        %v1075 = vunpack.c.l.b16 %v979
        %v1076 = vunpack.c.l.b16 %v980
        %v1077 = vunpack.c.l.b16 %v981
        %v1078 = vunpack.c.l.b16 %v982
        %v1079 = vunpack.c.l.b16 %v983
        %v1080 = vunpack.c.l.b16 %v984
        %v1081 = vunpack.c.l.b16 %v985
        %v1082 = vunpack.c.l.b16 %v986
        %v1083 = vunpack.c.l.b16 %v987
        %v1084 = vunpack.c.l.b16 %v988
        %v1085 = vunpack.c.l.b16 %v989
        %v1086 = vunpack.c.l.b16 %v990
        %v1087 = vunpack.c.l.b16 %v991
        %v1088 = vunpack.c.l.b16 %v992
        %v1089 = vunpack.c.l.b16 %v993
        %v1090 = vunpack.c.l.b16 %v994
        %v1091 = vunpack.c.l.b16 %v995
        %v1092 = vunpack.c.l.b16 %v996
        %v1093 = vunpack.c.l.b16 %v997
        %v1094 = vunpack.c.l.b16 %v998
        %v1095 = vunpack.c.l.b16 %v999
        %v1096 = vunpack.c.l.b16 %v1000
        %v1097 = vunpack.c.l.b16 %v1001
        %v1098 = vunpack.c.l.b16 %v1002
        %v1099 = vunpack.c.l.b16 %v1003
        %v1100 = vunpack.c.l.b16 %v1004
        %v1101 = vunpack.c.l.b16 %v1005
        %v1102 = vunpack.c.l.b16 %v1006
        %v1103 = vunpack.c.l.b16 %v1007
        %v1104 = vunpack.c.l.b16 %v1008
        %v1105 = vunpack.c.l.b16 %v1009
        %v1106 = vunpack.c.l.b16 %v1010
        %v1107 = vunpack.c.l.b16 %v1011
        %v1108 = vunpack.c.l.b16 %v1012
        %v1109 = vunpack.c.l.b16 %v1013
        %v1110 = vunpack.c.l.b16 %v1014
        %v1111 = vunpack.c.l.b16 %v1015
        %v1112 = vunpack.c.l.b16 %v1016
        %v1113 = vunpack.c.l.b16 %v1017
        %v1114 = vpack.c.b16 %v1067, %v1066
        %v1115 = vpack.c.b16 %v1069, %v1068
        %v1116 = vpack.c.b16 %v1071, %v1070
        %v1117 = vpack.c.b16 %v1073, %v1072
        %v1118 = vpack.c.b16 %v1075, %v1074
        %v1119 = vpack.c.b16 %v1077, %v1076
        %v1120 = vpack.c.b16 %v1079, %v1078
        %v1121 = vpack.c.b16 %v1081, %v1080
        %v1122 = vpack.c.b16 %v1083, %v1082
        %v1123 = vpack.c.b16 %v1085, %v1084
        %v1124 = vpack.c.b16 %v1087, %v1086
        %v1125 = vpack.c.b16 %v1089, %v1088
        %v1126 = vpack.c.b16 %v1091, %v1090
        %v1127 = vpack.c.b16 %v1093, %v1092
        %v1128 = vpack.c.b16 %v1095, %v1094
        %v1129 = vpack.c.b16 %v1097, %v1096
        %v1130 = vpack.c.b16 %v1099, %v1098
        %v1131 = vpack.c.b16 %v1101, %v1100
        %v1132 = vpack.c.b16 %v1103, %v1102
        %v1133 = vpack.c.b16 %v1105, %v1104
        %v1134 = vpack.c.b16 %v1107, %v1106
        %v1135 = vpack.c.b16 %v1109, %v1108
        %v1136 = vpack.c.b16 %v1111, %v1110
        %v1137 = vpack.c.b16 %v1113, %v1112
        %1162 = vmatpush.bf16.msra.mxu0 %v1121
        %1163 = vmatpush.bf16.msra.mxu0 %v1120
        %1164 = vmatpush.bf16.msra.mxu0 %v1119
        %1165 = vmatpush.bf16.msra.mxu0 %v1118
        %1166 = vmatpush.bf16.msra.mxu0 %v1117
        %1167 = vmatpush.bf16.msra.mxu0 %v1116
        %1168 = vmatpush.bf16.msra.mxu0 %v1115
        %1169 = vmatpush.bf16.msra.mxu0 %v1114
        %1170 = vmatmul.bf16.gmra.mxu0 %v268
        %v1171 = vpop.f32.mrf.mxu0
        %v1172 = vadd.f32 0.0, %v1171
        %v1173 = vpop.f32.mrf.mxu0
        %v1174 = vadd.f32 0.0, %v1173
        %1175 = vmatmul.bf16.gmra.mxu0 %v271
        %v1176 = vpop.f32.mrf.mxu0
        %v1177 = vadd.f32 0.0, %v1176
        %v1178 = vpop.f32.mrf.mxu0
        %v1179 = vadd.f32 0.0, %v1178
        %1180 = vmatmul.bf16.gmra.mxu0 %v274
        %v1181 = vpop.f32.mrf.mxu0
        %v1182 = vadd.f32 0.0, %v1181
        %v1183 = vpop.f32.mrf.mxu0
        %v1184 = vadd.f32 0.0, %v1183
        %1185 = vmatmul.bf16.gmra.mxu0 %v277
        %v1186 = vpop.f32.mrf.mxu0
        %v1187 = vadd.f32 0.0, %v1186
        %v1188 = vpop.f32.mrf.mxu0
        %v1189 = vadd.f32 0.0, %v1188
        %1190 = vmatmul.bf16.gmra.mxu0 %v280
        %v1191 = vpop.f32.mrf.mxu0
        %v1192 = vadd.f32 0.0, %v1191
        %v1193 = vpop.f32.mrf.mxu0
        %v1194 = vadd.f32 0.0, %v1193
        %1195 = vmatmul.bf16.gmra.mxu0 %v283
        %v1196 = vpop.f32.mrf.mxu0
        %v1197 = vadd.f32 0.0, %v1196
        %v1198 = vpop.f32.mrf.mxu0
        %v1199 = vadd.f32 0.0, %v1198
        %1200 = vmatmul.bf16.gmra.mxu0 %v286
        %v1201 = vpop.f32.mrf.mxu0
        %v1202 = vadd.f32 0.0, %v1201
        %v1203 = vpop.f32.mrf.mxu0
        %v1204 = vadd.f32 0.0, %v1203
        %1205 = vmatmul.bf16.gmra.mxu0 %v289
        %v1206 = vpop.f32.mrf.mxu0
        %v1207 = vadd.f32 0.0, %v1206
        %v1208 = vpop.f32.mrf.mxu0
        %v1209 = vadd.f32 0.0, %v1208
        %1210 = vdwg.mxu0
        %1211 = vmatpush.bf16.msra.mxu0 %v1129
        %1212 = vmatpush.bf16.msra.mxu0 %v1128
        %1213 = vmatpush.bf16.msra.mxu0 %v1127
        %1214 = vmatpush.bf16.msra.mxu0 %v1126
        %1215 = vmatpush.bf16.msra.mxu0 %v1125
        %1216 = vmatpush.bf16.msra.mxu0 %v1124
        %1217 = vmatpush.bf16.msra.mxu0 %v1123
        %1218 = vmatpush.bf16.msra.mxu0 %v1122
        %1219 = vmatmul.bf16.gmra.mxu0 %v269
        %v1220 = vpop.f32.mrf.mxu0
        %v1221 = vadd.f32 %v1172, %v1220
        %v1222 = vpop.f32.mrf.mxu0
        %v1223 = vadd.f32 %v1174, %v1222
        %1224 = vmatmul.bf16.gmra.mxu0 %v272
        %v1225 = vpop.f32.mrf.mxu0
        %v1226 = vadd.f32 %v1177, %v1225
        %v1227 = vpop.f32.mrf.mxu0
        %v1228 = vadd.f32 %v1179, %v1227
        %1229 = vmatmul.bf16.gmra.mxu0 %v275
        %v1230 = vpop.f32.mrf.mxu0
        %v1231 = vadd.f32 %v1182, %v1230
        %v1232 = vpop.f32.mrf.mxu0
        %v1233 = vadd.f32 %v1184, %v1232
        %1234 = vmatmul.bf16.gmra.mxu0 %v278
        %v1235 = vpop.f32.mrf.mxu0
        %v1236 = vadd.f32 %v1187, %v1235
        %v1237 = vpop.f32.mrf.mxu0
        %v1238 = vadd.f32 %v1189, %v1237
        %1239 = vmatmul.bf16.gmra.mxu0 %v281
        %v1240 = vpop.f32.mrf.mxu0
        %v1241 = vadd.f32 %v1192, %v1240
        %v1242 = vpop.f32.mrf.mxu0
        %v1243 = vadd.f32 %v1194, %v1242
        %1244 = vmatmul.bf16.gmra.mxu0 %v284
        %v1245 = vpop.f32.mrf.mxu0
        %v1246 = vadd.f32 %v1197, %v1245
        %v1247 = vpop.f32.mrf.mxu0
        %v1248 = vadd.f32 %v1199, %v1247
        %1249 = vmatmul.bf16.gmra.mxu0 %v287
        %v1250 = vpop.f32.mrf.mxu0
        %v1251 = vadd.f32 %v1202, %v1250
        %v1252 = vpop.f32.mrf.mxu0
        %v1253 = vadd.f32 %v1204, %v1252
        %1254 = vmatmul.bf16.gmra.mxu0 %v290
        %v1255 = vpop.f32.mrf.mxu0
        %v1256 = vadd.f32 %v1207, %v1255
        %v1257 = vpop.f32.mrf.mxu0
        %v1258 = vadd.f32 %v1209, %v1257
        %1259 = vdwg.mxu0
        %1260 = vmatpush.bf16.msra.mxu0 %v1137
        %1261 = vmatpush.bf16.msra.mxu0 %v1136
        %1262 = vmatpush.bf16.msra.mxu0 %v1135
        %1263 = vmatpush.bf16.msra.mxu0 %v1134
        %1264 = vmatpush.bf16.msra.mxu0 %v1133
        %1265 = vmatpush.bf16.msra.mxu0 %v1132
        %1266 = vmatpush.bf16.msra.mxu0 %v1131
        %1267 = vmatpush.bf16.msra.mxu0 %v1130
        %1268 = vmatmul.bf16.gmra.mxu0 %v270
        %v1269 = vpop.f32.mrf.mxu0
        %v1270 = vadd.f32 %v1221, %v1269
        %v1271 = vpop.f32.mrf.mxu0
        %v1272 = vadd.f32 %v1223, %v1271
        %1273 = vmatmul.bf16.gmra.mxu0 %v273
        %v1274 = vpop.f32.mrf.mxu0
        %v1275 = vadd.f32 %v1226, %v1274
        %v1276 = vpop.f32.mrf.mxu0
        %v1277 = vadd.f32 %v1228, %v1276
        %1278 = vmatmul.bf16.gmra.mxu0 %v276
        %v1279 = vpop.f32.mrf.mxu0
        %v1280 = vadd.f32 %v1231, %v1279
        %v1281 = vpop.f32.mrf.mxu0
        %v1282 = vadd.f32 %v1233, %v1281
        %1283 = vmatmul.bf16.gmra.mxu0 %v279
        %v1284 = vpop.f32.mrf.mxu0
        %v1285 = vadd.f32 %v1236, %v1284
        %v1286 = vpop.f32.mrf.mxu0
        %v1287 = vadd.f32 %v1238, %v1286
        %1288 = vmatmul.bf16.gmra.mxu0 %v282
        %v1289 = vpop.f32.mrf.mxu0
        %v1290 = vadd.f32 %v1241, %v1289
        %v1291 = vpop.f32.mrf.mxu0
        %v1292 = vadd.f32 %v1243, %v1291
        %1293 = vmatmul.bf16.gmra.mxu0 %v285
        %v1294 = vpop.f32.mrf.mxu0
        %v1295 = vadd.f32 %v1246, %v1294
        %v1296 = vpop.f32.mrf.mxu0
        %v1297 = vadd.f32 %v1248, %v1296
        %1298 = vmatmul.bf16.gmra.mxu0 %v288
        %v1299 = vpop.f32.mrf.mxu0
        %v1300 = vadd.f32 %v1251, %v1299
        %v1301 = vpop.f32.mrf.mxu0
        %v1302 = vadd.f32 %v1253, %v1301
        %1303 = vmatmul.bf16.gmra.mxu0 %v291
        %v1304 = vpop.f32.mrf.mxu0
        %v1305 = vadd.f32 %v1256, %v1304
        %v1306 = vpop.f32.mrf.mxu0
        %v1307 = vadd.f32 %v1258, %v1306
        %1308 = vdwg.mxu0
        %v1309 = vmul.f32 %v592, 0.05103104
        %v1310 = vmul.f32 %v594, 0.05103104
        %v1311 = vmul.f32 %v597, 0.05103104
        %v1312 = vmul.f32 %v599, 0.05103104
        %v1313 = vmul.f32 %v602, 0.05103104
        %v1314 = vmul.f32 %v604, 0.05103104
        %v1315 = vmul.f32 %v607, 0.05103104
        %v1316 = vmul.f32 %v609, 0.05103104
        %v1317 = vmul.f32 %v612, 0.05103104
        %v1318 = vmul.f32 %v614, 0.05103104
        %v1319 = vmul.f32 %v617, 0.05103104
        %v1320 = vmul.f32 %v619, 0.05103104
        %v1321 = vmul.f32 %v622, 0.05103104
        %v1322 = vmul.f32 %v624, 0.05103104
        %v1323 = vmul.f32 %v627, 0.05103104
        %v1324 = vmul.f32 %v629, 0.05103104
        %v1325 = vlaneseq
        %v1326 = vshrl.u32 %v1325, 7
        %v1327 = vadd.s32 %v1326, 8
        %v1328 = vadd.s32 %v1326, 16
        %v1329 = vadd.s32 %v1326, 24
        %v1330 = vadd.s32 %v1326, 32
        %v1331 = vadd.s32 %v1326, 40
        %v1332 = vadd.s32 %v1326, 48
        %v1333 = vadd.s32 %v1326, 56
        %v1334 = vadd.s32 %v1326, 64
        %v1335 = vadd.s32 %v1326, 72
        %v1336 = vadd.s32 %v1326, 80
        %v1337 = vadd.s32 %v1326, 88
        %v1338 = vadd.s32 %v1326, 96
        %v1339 = vadd.s32 %v1326, 104
        %v1340 = vadd.s32 %v1326, 112
        %v1341 = vadd.s32 %v1326, 120
        %v1342 = vlaneseq
        %v1343 = vand.u32 %v1342, 127
        %vm1344 = vcmp.le.s32.totalorder %v1343, %v1326
        %vm1345 = vcmp.le.s32.totalorder %v1343, %v1327
        %vm1346 = vcmp.le.s32.totalorder %v1343, %v1328
        %vm1347 = vcmp.le.s32.totalorder %v1343, %v1329
        %vm1348 = vcmp.le.s32.totalorder %v1343, %v1330
        %vm1349 = vcmp.le.s32.totalorder %v1343, %v1331
        %vm1350 = vcmp.le.s32.totalorder %v1343, %v1332
        %vm1351 = vcmp.le.s32.totalorder %v1343, %v1333
        %vm1352 = vcmp.le.s32.totalorder %v1343, %v1334
        %vm1353 = vcmp.le.s32.totalorder %v1343, %v1335
        %vm1354 = vcmp.le.s32.totalorder %v1343, %v1336
        %vm1355 = vcmp.le.s32.totalorder %v1343, %v1337
        %vm1356 = vcmp.le.s32.totalorder %v1343, %v1338
        %vm1357 = vcmp.le.s32.totalorder %v1343, %v1339
        %vm1358 = vcmp.le.s32.totalorder %v1343, %v1340
        %vm1359 = vcmp.le.s32.totalorder %v1343, %v1341
        %v1360 = vpack.c.bf16 %v1310, %v1309
        %v1361 = vpack.c.bf16 %v1312, %v1311
        %v1362 = vpack.c.bf16 %v1314, %v1313
        %v1363 = vpack.c.bf16 %v1316, %v1315
        %v1364 = vpack.c.bf16 %v1318, %v1317
        %v1365 = vpack.c.bf16 %v1320, %v1319
        %v1366 = vpack.c.bf16 %v1322, %v1321
        %v1367 = vpack.c.bf16 %v1324, %v1323
        %v1368 = vpack.c.bf16 %v933, %v931
        %v1369 = vpack.c.bf16 %v938, %v936
        %v1370 = vpack.c.bf16 %v943, %v941
        %v1371 = vpack.c.bf16 %v948, %v946
        %v1372 = vpack.c.bf16 %v953, %v951
        %v1373 = vpack.c.bf16 %v958, %v956
        %v1374 = vpack.c.bf16 %v963, %v961
        %v1375 = vpack.c.bf16 %v968, %v966
        %v1376 = vpack.c.bf16 %v1272, %v1270
        %v1377 = vpack.c.bf16 %v1277, %v1275
        %v1378 = vpack.c.bf16 %v1282, %v1280
        %v1379 = vpack.c.bf16 %v1287, %v1285
        %v1380 = vpack.c.bf16 %v1292, %v1290
        %v1381 = vpack.c.bf16 %v1297, %v1295
        %v1382 = vpack.c.bf16 %v1302, %v1300
        %v1383 = vpack.c.bf16 %v1307, %v1305
        %vm1384 = vcmask 523264
        %v1386 = vsel %vm1384, %v1360, 0
        %v1389 = vsel %vm1384, %v1361, 0
        %v1392 = vsel %vm1384, %v1362, 0
        %v1395 = vsel %vm1384, %v1363, 0
        %v1398 = vsel %vm1384, %v1364, 0
        %v1401 = vsel %vm1384, %v1365, 0
        %v1404 = vsel %vm1384, %v1366, 0
        %v1407 = vsel %vm1384, %v1367, 0
        %v1410 = vsel %vm1384, %v1368, 0
        %v1413 = vsel %vm1384, %v1369, 0
        %v1416 = vsel %vm1384, %v1370, 0
        %v1419 = vsel %vm1384, %v1371, 0
        %v1422 = vsel %vm1384, %v1372, 0
        %v1425 = vsel %vm1384, %v1373, 0
        %v1428 = vsel %vm1384, %v1374, 0
        %v1431 = vsel %vm1384, %v1375, 0
        %1433 = vmatpush.bf16.xpose.msra.mxu0 %v1431
        %1434 = vmatpush.bf16.xpose.msra.mxu0 %v1428
        %1435 = vmatpush.bf16.xpose.msra.mxu0 %v1425
        %1436 = vmatpush.bf16.xpose.msra.mxu0 %v1422
        %1437 = vmatpush.bf16.xpose.msra.mxu0 %v1419
        %1438 = vmatpush.bf16.xpose.msra.mxu0 %v1416
        %1439 = vmatpush.bf16.xpose.msra.mxu0 %v1413
        %1440 = vmatpush.bf16.xpose.msra.mxu0 %v1410
        %1441 = vmatmul.bf16.gmra.mxu0 %v1386
        %v1442 = vpop.f32.mrf.mxu0
        %v1443 = vadd.f32 0.0, %v1442
        %v1444 = vpop.f32.mrf.mxu0
        %v1445 = vadd.f32 0.0, %v1444
        %1446 = vmatmul.bf16.gmra.mxu0 %v1389
        %v1447 = vpop.f32.mrf.mxu0
        %v1448 = vadd.f32 0.0, %v1447
        %v1449 = vpop.f32.mrf.mxu0
        %v1450 = vadd.f32 0.0, %v1449
        %1451 = vmatmul.bf16.gmra.mxu0 %v1392
        %v1452 = vpop.f32.mrf.mxu0
        %v1453 = vadd.f32 0.0, %v1452
        %v1454 = vpop.f32.mrf.mxu0
        %v1455 = vadd.f32 0.0, %v1454
        %1456 = vmatmul.bf16.gmra.mxu0 %v1395
        %v1457 = vpop.f32.mrf.mxu0
        %v1458 = vadd.f32 0.0, %v1457
        %v1459 = vpop.f32.mrf.mxu0
        %v1460 = vadd.f32 0.0, %v1459
        %1461 = vmatmul.bf16.gmra.mxu0 %v1398
        %v1462 = vpop.f32.mrf.mxu0
        %v1463 = vadd.f32 0.0, %v1462
        %v1464 = vpop.f32.mrf.mxu0
        %v1465 = vadd.f32 0.0, %v1464
        %1466 = vmatmul.bf16.gmra.mxu0 %v1401
        %v1467 = vpop.f32.mrf.mxu0
        %v1468 = vadd.f32 0.0, %v1467
        %v1469 = vpop.f32.mrf.mxu0
        %v1470 = vadd.f32 0.0, %v1469
        %1471 = vmatmul.bf16.gmra.mxu0 %v1404
        %v1472 = vpop.f32.mrf.mxu0
        %v1473 = vadd.f32 0.0, %v1472
        %v1474 = vpop.f32.mrf.mxu0
        %v1475 = vadd.f32 0.0, %v1474
        %1476 = vmatmul.bf16.gmra.mxu0 %v1407
        %v1477 = vpop.f32.mrf.mxu0
        %v1478 = vadd.f32 0.0, %v1477
        %v1479 = vpop.f32.mrf.mxu0
        %v1480 = vadd.f32 0.0, %v1479
        %1481 = vdwg.mxu0
        %v1482 = vsel %vm1344, %v1443, -1e+30
        %v1483 = vsel %vm1345, %v1445, -1e+30
        %v1484 = vsel %vm1346, %v1448, -1e+30
        %v1485 = vsel %vm1347, %v1450, -1e+30
        %v1486 = vsel %vm1348, %v1453, -1e+30
        %v1487 = vsel %vm1349, %v1455, -1e+30
        %v1488 = vsel %vm1350, %v1458, -1e+30
        %v1489 = vsel %vm1351, %v1460, -1e+30
        %v1490 = vsel %vm1352, %v1463, -1e+30
        %v1491 = vsel %vm1353, %v1465, -1e+30
        %v1492 = vsel %vm1354, %v1468, -1e+30
        %v1493 = vsel %vm1355, %v1470, -1e+30
        %v1494 = vsel %vm1356, %v1473, -1e+30
        %v1495 = vsel %vm1357, %v1475, -1e+30
        %v1496 = vsel %vm1358, %v1478, -1e+30
        %v1497 = vsel %vm1359, %v1480, -1e+30
        %1498 = vmax.xlane.f32.xlu0 %v1482
        %v1499 = vpop.xlane.xlu0 %1498
        %1500 = vmax.xlane.f32.xlu0 %v1483
        %v1501 = vpop.xlane.xlu0 %1500
        %1502 = vmax.xlane.f32.xlu0 %v1484
        %v1503 = vpop.xlane.xlu0 %1502
        %1504 = vmax.xlane.f32.xlu0 %v1485
        %v1505 = vpop.xlane.xlu0 %1504
        %1506 = vmax.xlane.f32.xlu0 %v1486
        %v1507 = vpop.xlane.xlu0 %1506
        %1508 = vmax.xlane.f32.xlu0 %v1487
        %v1509 = vpop.xlane.xlu0 %1508
        %1510 = vmax.xlane.f32.xlu0 %v1488
        %v1511 = vpop.xlane.xlu0 %1510
        %1512 = vmax.xlane.f32.xlu0 %v1489
        %v1513 = vpop.xlane.xlu0 %1512
        %1514 = vmax.xlane.f32.xlu0 %v1490
        %v1515 = vpop.xlane.xlu0 %1514
        %1516 = vmax.xlane.f32.xlu0 %v1491
        %v1517 = vpop.xlane.xlu0 %1516
        %1518 = vmax.xlane.f32.xlu0 %v1492
        %v1519 = vpop.xlane.xlu0 %1518
        %1520 = vmax.xlane.f32.xlu0 %v1493
        %v1521 = vpop.xlane.xlu0 %1520
        %1522 = vmax.xlane.f32.xlu0 %v1494
        %v1523 = vpop.xlane.xlu0 %1522
        %1524 = vmax.xlane.f32.xlu0 %v1495
        %v1525 = vpop.xlane.xlu0 %1524
        %1526 = vmax.xlane.f32.xlu0 %v1496
        %v1527 = vpop.xlane.xlu0 %1526
        %1528 = vmax.xlane.f32.xlu0 %v1497
        %v1529 = vpop.xlane.xlu0 %1528
        %v1530 = vsub.f32 %v1482, %v1499
        %v1531 = vsub.f32 %v1483, %v1501
        %v1532 = vsub.f32 %v1484, %v1503
        %v1533 = vsub.f32 %v1485, %v1505
        %v1534 = vsub.f32 %v1486, %v1507
        %v1535 = vsub.f32 %v1487, %v1509
        %v1536 = vsub.f32 %v1488, %v1511
        %v1537 = vsub.f32 %v1489, %v1513
        %v1538 = vsub.f32 %v1490, %v1515
        %v1539 = vsub.f32 %v1491, %v1517
        %v1540 = vsub.f32 %v1492, %v1519
        %v1541 = vsub.f32 %v1493, %v1521
        %v1542 = vsub.f32 %v1494, %v1523
        %v1543 = vsub.f32 %v1495, %v1525
        %v1544 = vsub.f32 %v1496, %v1527
        %v1545 = vsub.f32 %v1497, %v1529
        %v1546 = vmul.f32 %v1530, 1.442695
        %v1547 = vpow.pop %v1546
        %v1548 = vmul.f32 %v1531, 1.442695
        %v1549 = vpow.pop %v1548
        %v1550 = vmul.f32 %v1532, 1.442695
        %v1551 = vpow.pop %v1550
        %v1552 = vmul.f32 %v1533, 1.442695
        %v1553 = vpow.pop %v1552
        %v1554 = vmul.f32 %v1534, 1.442695
        %v1555 = vpow.pop %v1554
        %v1556 = vmul.f32 %v1535, 1.442695
        %v1557 = vpow.pop %v1556
        %v1558 = vmul.f32 %v1536, 1.442695
        %v1559 = vpow.pop %v1558
        %v1560 = vmul.f32 %v1537, 1.442695
        %v1561 = vpow.pop %v1560
        %v1562 = vmul.f32 %v1538, 1.442695
        %v1563 = vpow.pop %v1562
        %v1564 = vmul.f32 %v1539, 1.442695
        %v1565 = vpow.pop %v1564
        %v1566 = vmul.f32 %v1540, 1.442695
        %v1567 = vpow.pop %v1566
        %v1568 = vmul.f32 %v1541, 1.442695
        %v1569 = vpow.pop %v1568
        %v1570 = vmul.f32 %v1542, 1.442695
        %v1571 = vpow.pop %v1570
        %v1572 = vmul.f32 %v1543, 1.442695
        %v1573 = vpow.pop %v1572
        %v1574 = vmul.f32 %v1544, 1.442695
        %v1575 = vpow.pop %v1574
        %v1576 = vmul.f32 %v1545, 1.442695
        %v1577 = vpow.pop %v1576
        %1578 = vadd.xlane.f32.xlu0 %v1547
        %v1579 = vpop.xlane.xlu0 %1578
        %1580 = vadd.xlane.f32.xlu0 %v1549
        %v1581 = vpop.xlane.xlu0 %1580
        %1582 = vadd.xlane.f32.xlu0 %v1551
        %v1583 = vpop.xlane.xlu0 %1582
        %1584 = vadd.xlane.f32.xlu0 %v1553
        %v1585 = vpop.xlane.xlu0 %1584
        %1586 = vadd.xlane.f32.xlu0 %v1555
        %v1587 = vpop.xlane.xlu0 %1586
        %1588 = vadd.xlane.f32.xlu0 %v1557
        %v1589 = vpop.xlane.xlu0 %1588
        %1590 = vadd.xlane.f32.xlu0 %v1559
        %v1591 = vpop.xlane.xlu0 %1590
        %1592 = vadd.xlane.f32.xlu0 %v1561
        %v1593 = vpop.xlane.xlu0 %1592
        %1594 = vadd.xlane.f32.xlu0 %v1563
        %v1595 = vpop.xlane.xlu0 %1594
        %1596 = vadd.xlane.f32.xlu0 %v1565
        %v1597 = vpop.xlane.xlu0 %1596
        %1598 = vadd.xlane.f32.xlu0 %v1567
        %v1599 = vpop.xlane.xlu0 %1598
        %1600 = vadd.xlane.f32.xlu0 %v1569
        %v1601 = vpop.xlane.xlu0 %1600
        %1602 = vadd.xlane.f32.xlu0 %v1571
        %v1603 = vpop.xlane.xlu0 %1602
        %1604 = vadd.xlane.f32.xlu0 %v1573
        %v1605 = vpop.xlane.xlu0 %1604
        %1606 = vadd.xlane.f32.xlu0 %v1575
        %v1607 = vpop.xlane.xlu0 %1606
        %1608 = vadd.xlane.f32.xlu0 %v1577
        %v1609 = vpop.xlane.xlu0 %1608
        %v1610 = vrcp.pop %v1579
        %v1611 = vrcp.pop %v1581
        %v1612 = vrcp.pop %v1583
        %v1613 = vrcp.pop %v1585
        %v1614 = vrcp.pop %v1587
        %v1615 = vrcp.pop %v1589
        %v1616 = vrcp.pop %v1591
        %v1617 = vrcp.pop %v1593
        %v1618 = vrcp.pop %v1595
        %v1619 = vrcp.pop %v1597
        %v1620 = vrcp.pop %v1599
        %v1621 = vrcp.pop %v1601
        %v1622 = vrcp.pop %v1603
        %v1623 = vrcp.pop %v1605
        %v1624 = vrcp.pop %v1607
        %v1625 = vrcp.pop %v1609
        %v1626 = vmul.f32 %v1547, %v1610
        %v1627 = vmul.f32 %v1549, %v1611
        %v1628 = vmul.f32 %v1551, %v1612
        %v1629 = vmul.f32 %v1553, %v1613
        %v1630 = vmul.f32 %v1555, %v1614
        %v1631 = vmul.f32 %v1557, %v1615
        %v1632 = vmul.f32 %v1559, %v1616
        %v1633 = vmul.f32 %v1561, %v1617
        %v1634 = vmul.f32 %v1563, %v1618
        %v1635 = vmul.f32 %v1565, %v1619
        %v1636 = vmul.f32 %v1567, %v1620
        %v1637 = vmul.f32 %v1569, %v1621
        %v1638 = vmul.f32 %v1571, %v1622
        %v1639 = vmul.f32 %v1573, %v1623
        %v1640 = vmul.f32 %v1575, %v1624
        %v1641 = vmul.f32 %v1577, %v1625
        %v1642 = vpack.c.bf16 %v1627, %v1626
        %v1643 = vpack.c.bf16 %v1629, %v1628
        %v1644 = vpack.c.bf16 %v1631, %v1630
        %v1645 = vpack.c.bf16 %v1633, %v1632
        %v1646 = vpack.c.bf16 %v1635, %v1634
        %v1647 = vpack.c.bf16 %v1637, %v1636
        %v1648 = vpack.c.bf16 %v1639, %v1638
        %v1649 = vpack.c.bf16 %v1641, %v1640
        %1650 = vmatpush.bf16.msra.mxu0 %v1383
        %1651 = vmatpush.bf16.msra.mxu0 %v1382
        %1652 = vmatpush.bf16.msra.mxu0 %v1381
        %1653 = vmatpush.bf16.msra.mxu0 %v1380
        %1654 = vmatpush.bf16.msra.mxu0 %v1379
        %1655 = vmatpush.bf16.msra.mxu0 %v1378
        %1656 = vmatpush.bf16.msra.mxu0 %v1377
        %1657 = vmatpush.bf16.msra.mxu0 %v1376
        %1658 = vmatmul.bf16.gmra.mxu0 %v1642
        %v1659 = vpop.f32.mrf.mxu0
        %v1660 = vadd.f32 0.0, %v1659
        %v1661 = vpop.f32.mrf.mxu0
        %v1662 = vadd.f32 0.0, %v1661
        %1663 = vmatmul.bf16.gmra.mxu0 %v1643
        %v1664 = vpop.f32.mrf.mxu0
        %v1665 = vadd.f32 0.0, %v1664
        %v1666 = vpop.f32.mrf.mxu0
        %v1667 = vadd.f32 0.0, %v1666
        %1668 = vmatmul.bf16.gmra.mxu0 %v1644
        %v1669 = vpop.f32.mrf.mxu0
        %v1670 = vadd.f32 0.0, %v1669
        %v1671 = vpop.f32.mrf.mxu0
        %v1672 = vadd.f32 0.0, %v1671
        %1673 = vmatmul.bf16.gmra.mxu0 %v1645
        %v1674 = vpop.f32.mrf.mxu0
        %v1675 = vadd.f32 0.0, %v1674
        %v1676 = vpop.f32.mrf.mxu0
        %v1677 = vadd.f32 0.0, %v1676
        %1678 = vmatmul.bf16.gmra.mxu0 %v1646
        %v1679 = vpop.f32.mrf.mxu0
        %v1680 = vadd.f32 0.0, %v1679
        %v1681 = vpop.f32.mrf.mxu0
        %v1682 = vadd.f32 0.0, %v1681
        %1683 = vmatmul.bf16.gmra.mxu0 %v1647
        %v1684 = vpop.f32.mrf.mxu0
        %v1685 = vadd.f32 0.0, %v1684
        %v1686 = vpop.f32.mrf.mxu0
        %v1687 = vadd.f32 0.0, %v1686
        %1688 = vmatmul.bf16.gmra.mxu0 %v1648
        %v1689 = vpop.f32.mrf.mxu0
        %v1690 = vadd.f32 0.0, %v1689
        %v1691 = vpop.f32.mrf.mxu0
        %v1692 = vadd.f32 0.0, %v1691
        %1693 = vmatmul.bf16.gmra.mxu0 %v1649
        %v1694 = vpop.f32.mrf.mxu0
        %v1695 = vadd.f32 0.0, %v1694
        %v1696 = vpop.f32.mrf.mxu0
        %v1697 = vadd.f32 0.0, %v1696
        %1698 = vdwg.mxu0
        %1699 = vst.msk [vmem:[%s219] sm:$0xff] %vm1384, %v1660
        %1700 = vst.msk [vmem:[%s219 + $0x8] sm:$0xff] %vm1384, %v1662
        %1701 = vst.msk [vmem:[%s219 + $0x10] sm:$0xff] %vm1384, %v1665
        %1702 = vst.msk [vmem:[%s219 + $0x18] sm:$0xff] %vm1384, %v1667
        %1703 = vst.msk [vmem:[%s219 + $0x20] sm:$0xff] %vm1384, %v1670
        %1704 = vst.msk [vmem:[%s219 + $0x28] sm:$0xff] %vm1384, %v1672
        %1705 = vst.msk [vmem:[%s219 + $0x30] sm:$0xff] %vm1384, %v1675
        %1706 = vst.msk [vmem:[%s219 + $0x38] sm:$0xff] %vm1384, %v1677
        %1707 = vst.msk [vmem:[%s219 + $0x40] sm:$0xff] %vm1384, %v1680
        %1708 = vst.msk [vmem:[%s219 + $0x48] sm:$0xff] %vm1384, %v1682
        %1709 = vst.msk [vmem:[%s219 + $0x50] sm:$0xff] %vm1384, %v1685
        %1710 = vst.msk [vmem:[%s219 + $0x58] sm:$0xff] %vm1384, %v1687
        %1711 = vst.msk [vmem:[%s219 + $0x60] sm:$0xff] %vm1384, %v1690
        %1712 = vst.msk [vmem:[%s219 + $0x68] sm:$0xff] %vm1384, %v1692
        %1713 = vst.msk [vmem:[%s219 + $0x70] sm:$0xff] %vm1384, %v1695
        %1714 = vst.msk [vmem:[%s219 + $0x78] sm:$0xff] %vm1384, %v1697
        %p1715 = scmp.lt.s32.totalorder %s18, 1
        %s1716 = scalar_select %p1715, %s18, 1
        %s1717 = smul.addr %s1716, 16
        %s1718 = smul.addr %s1717, 8
        %s1719 = scalar_lea.vmem %s4, %s1718
        // Predicated region
        $region41: #{tpu_custom_call.1} parent=35 // pred_check
          %p1720 = pneg %p125
        $region42: #{tpu_custom_call.1} parent=35 // pred_check_branch
          %1722 = sbr.rel (%p1720) target = $region44
        $region43: #{tpu_custom_call.1} parent=35 // pred_region
          _
        $region44: #{tpu_custom_call.1} parent=35 // pred_fallthru
          _
      $region36: #{tpu_custom_call.1} parent=5 // pred_fallthru
        _
      %p1723 = scmp.le.s32.totalorder 2, %s13
      // Predicated region
      $region45: #{tpu_custom_call.1} parent=5 // pred_check
        %p1724 = pneg %p1723
      $region46: #{tpu_custom_call.1} parent=5 // pred_check_branch
        %1726 = sbr.rel (%p1724) target = $region48
      $region47: #{tpu_custom_call.1} parent=5 // pred_region
        %s1727 = ssub.s32 %s13, 2
        // Predicated region
        $region49: #{tpu_custom_call.1} parent=47 // pred_check
          %p1728 = pneg %p131
        $region50: #{tpu_custom_call.1} parent=47 // pred_check_branch
          %1730 = sbr.rel (%p1728) target = $region52
        $region51: #{tpu_custom_call.1} parent=47 // pred_region
          %p1731 = scmp.lt.s32.totalorder %s19, 1
          %s1732 = scalar_select %p1731, %s19, 1
          %s1733 = smul.addr %s1732, 16
          %s1734 = smul.addr %s1733, 8
          %s1735 = scalar_lea.vmem %s4, %s1734
        $region52: #{tpu_custom_call.1} parent=47 // pred_fallthru
          _
      $region48: #{tpu_custom_call.1} parent=5 // pred_fallthru
        _
    $region6: #{tpu_custom_call.1} parent=1 // loop_footer
      %s17 = sadd.s32 1, %s13
    $region7: #{tpu_custom_call.1} parent=1 // loop_footer_branch
      %12 = sbr.rel target = $region3
    $region8: #{tpu_custom_call.1} parent=1 // loop_exit
      _
    %1736 = vsyncpa [#allocation3], 1
    %s1737 = scalar_lea.sflag [#allocation3], 1
    %1738 = vsyncpa %s1737, 1

</llo_original>
